<compile_context>
chip_gen: v5e
topology: v5e:2x2
jax: 0.10.0
libtpu: 0.0.40
codegen_flags: <defaults>
</compile_context>

<pallas_src>
import jax
import jax.numpy as jnp
from jax import lax
from jax.experimental import pallas as pl
from jax.experimental.pallas import tpu as pltpu


def selectk_kernel(x_ref, wres_ref, bres_ref, wsel_ref, wdown_ref, wup_ref,
                   out_ref, z_ref):
    # x_ref:    (G, TM, H)  f32 draft hidden states for this row tile
    # wres_ref: (R, H, H)   bf16 ResBlock weights, in-features first
    # bres_ref: (R, 1, H)   f32 ResBlock biases
    # wsel_ref: (T, G)      f32 selection_layer weight (SMEM, scalar reads)
    # wdown_ref:(H, A)      bf16 down_proj weight, in-features first
    # wup_ref:  (A, H)      bf16 up_proj weight, in-features first
    # out_ref:  (T, TM, H)
    # z_ref:    (T*TM, H)   f32 VMEM scratch for the selection-mixed slab
    G, TM, H = x_ref.shape
    R = wres_ref.shape[0]
    T = out_ref.shape[0]

    # --- ResBlock chain, batched over the G groups (Wr is shared): one fat
    #     (G*TM, H) x (H, H) matmul per layer.  Carry stays f32; operands are
    #     cast to bf16 only at the MXU feed (cast hides under MXU slack). ---
    y = x_ref[...].reshape(G * TM, H).astype(jnp.float32)
    for r in range(R):
        lin = jnp.dot(y.astype(jnp.bfloat16), wres_ref[r],
                      preferred_element_type=jnp.float32) + bres_ref[r]
        y = y + lin * jax.nn.sigmoid(lin)          # SiLU kept in f32

    # --- selection_layer: mix G groups into T top-k groups (scalar FMA on the
    #     VPU; G and T are tiny).  Each accumulator is written directly into a
    #     contiguous (T*TM, H) scratch slab (no jnp.concatenate copy), so both
    #     projections below are single batched matmuls over T*TM rows. ---
    y3 = y.reshape(G, TM, H)
    for t in range(T):
        acc = wsel_ref[t, 0] * y3[0]
        for g in range(1, G):
            acc = acc + wsel_ref[t, g] * y3[g]
        z_ref[pl.ds(t * TM, TM), :] = acc

    z = z_ref[...]                                             # (T*TM, H) f32
    down = jnp.dot(z.astype(jnp.bfloat16), wdown_ref[...],
                   preferred_element_type=jnp.float32)         # (T*TM, A)
    # TODO(synk): RouterModel (self.r) is not defined in the source module; it
    # is treated as identity on the per-group hidden states.
    up = jnp.dot(down.astype(jnp.bfloat16), wup_ref[...],
                 preferred_element_type=jnp.float32)           # (T*TM, H)
    out_ref[...] = up.reshape(T, TM, H).astype(out_ref.dtype)


def _tpu_vmem_capacity_bytes():
    try:
        cap = getattr(pltpu.get_tpu_info(), "vmem_capacity_bytes", None)
        if cap:
            return int(cap)
    except Exception:
        pass
    return 128 * 1024 * 1024           # v5e/v6e default if query unavailable


def _generation_config():
    cap = _tpu_vmem_capacity_bytes()
    vmem_limit = int(cap * 3 // 4)     # leave headroom for compiler scratch
    tm_target = 128 if cap <= 64 * 1024 * 1024 else 256   # v7x vs v5e/v6e
    return tm_target, vmem_limit


def _pick_tm(M, target):
    """Largest row tile <= target (multiple of 16 preferred for bf16 sublane
    packing) that divides M, preferring an EVEN grid length so the parallel
    axis splits evenly across v7x's two TensorCores."""
    if M % 8 != 0:
        return M                                    # full-extent block is legal
    cands = [t for t in range(16, min(target, M) + 1, 16) if M % t == 0]
    if not cands:
        cands = [t for t in range(8, min(target, M) + 1, 8) if M % t == 0]
    if not cands:
        return M
    even = [t for t in cands if (M // t) % 2 == 0]
    pool = even if even else cands
    return pool[-1]


def prepare_weights(wres, bres, wsel, wdown, wup):
    """One-time weight transform (in-features-first transpose + bf16 cast).
    Hoisted out of the hot path: call once, reuse on every forward step."""
    R = wres.shape[0]
    wres_t = jnp.swapaxes(wres, 1, 2).astype(jnp.bfloat16)       # (R, H, H)
    bres3 = bres.reshape(R, 1, -1).astype(jnp.float32)           # (R, 1, H)
    wsel_f = wsel.astype(jnp.float32)                            # (T, G)
    wdown_t = wdown.T.astype(jnp.bfloat16)                       # (H, A)
    wup_t = wup.T.astype(jnp.bfloat16)                           # (A, H)
    return wres_t, bres3, wsel_f, wdown_t, wup_t


def select_k_groups_attn(x, prepared, *, tm=None):
    """x: (G, B, S, H) float32; prepared = prepare_weights(...).
    Returns (T, B, S, H) in x.dtype."""
    wres_t, bres3, wsel_f, wdown_t, wup_t = prepared
    G, B, S, H = x.shape
    R, T = wres_t.shape[0], wsel_f.shape[0]
    A = wdown_t.shape[1]
    M = B * S

    tm_target, vmem_limit = _generation_config()
    if tm is None:
        tm = _pick_tm(M, tm_target)
    assert M % tm == 0, "row tile must divide B*S"

    # Activations are passed in their producer dtype (no wrapper-side cast —
    # the kernel casts to bf16 at the MXU feed); reshape is free.
    x2 = x.reshape(G, M, H)

    cost = pl.CostEstimate(
        flops=2 * M * (G * R * H * H + T * G * H + T * H * A + T * A * H),
        transcendentals=M * G * R * H,
        bytes_accessed=(G * M * H * x.dtype.itemsize
                        + T * M * H * x.dtype.itemsize
                        + wres_t.size * 2 + bres3.size * 4 + wsel_f.size * 4
                        + wdown_t.size * 2 + wup_t.size * 2),
    )

    def build_call(single_buffer_weights):
        def wspec(shape, index_map):
            if single_buffer_weights:
                # Constant index maps never re-fetch: one resident copy only.
                return pl.BlockSpec(shape, index_map,
                                    pipeline_mode=pl.Buffered(1))
            return pl.BlockSpec(shape, index_map)

        return pl.pallas_call(
            selectk_kernel,
            out_shape=jax.ShapeDtypeStruct((T, M, H), x.dtype),
            grid=(M // tm,),
            in_specs=[
                pl.BlockSpec((G, tm, H), lambda m: (0, m, 0)),       # x tile
                wspec((R, H, H), lambda m: (0, 0, 0)),               # resnet W
                wspec((R, 1, H), lambda m: (0, 0, 0)),               # resnet b
                pl.BlockSpec(memory_space=pltpu.MemorySpace.SMEM),   # wsel
                wspec((H, A), lambda m: (0, 0)),                     # down_proj
                wspec((A, H), lambda m: (0, 0)),                     # up_proj
            ],
            out_specs=pl.BlockSpec((T, tm, H), lambda m: (0, m, 0)),
            scratch_shapes=[pltpu.VMEM((T * tm, H), jnp.float32)],
            compiler_params=pltpu.CompilerParams(
                dimension_semantics=("parallel",),
                vmem_limit_bytes=vmem_limit),
            cost_estimate=cost,
        )

    args = (x2, wres_t, bres3, wsel_f, wdown_t, wup_t)
    try:
        out = build_call(True)(*args)
    except Exception:
        # Fallback if this jax build rejects single-buffered BlockSpecs.
        out = build_call(False)(*args)
    return out.reshape(T, B, S, H)


def ref_forward(x, wres, bres, wsel, wdown, wup):
    """Pure-JAX reference mirroring the PyTorch forward (router = identity),
    with the same bf16-operand / f32-accumulate matmul numerics as the kernel."""
    bf = jnp.bfloat16
    h = x.astype(jnp.float32)
    for r in range(wres.shape[0]):
        lin = jnp.einsum('gbsh,oh->gbso', h.astype(bf), wres[r].astype(bf),
                         preferred_element_type=jnp.float32) + bres[r]
        h = h + lin * jax.nn.sigmoid(lin)
    sel = jnp.einsum('tg,gbsh->tbsh', wsel, h,
                     precision=lax.Precision.HIGHEST,
                     preferred_element_type=jnp.float32)
    down = jnp.einsum('tbsh,ah->tbsa', sel.astype(bf), wdown.astype(bf),
                      preferred_element_type=jnp.float32)
    up = jnp.einsum('tbsa,ha->tbsh', down.astype(bf), wup.astype(bf),
                    preferred_element_type=jnp.float32)
    return up


if __name__ == "__main__":
    # module hyperparams: num_group, top_k_group, hidden_size, resnet_num, attn_hid_dim
    G, T, H, R, A = 4, 2, 32, 2, 16
    B, S = 2, 16

    key = jax.random.PRNGKey(0)
    ks = jax.random.split(key, 6)
    x = jax.random.normal(ks[0], (G, B, S, H), jnp.float32)
    # NOTE: the PyTorch __init__ zero-inits the ResBlock linear weight; we use
    # small deterministic random weights so the matmul path is exercised.
    wres = 0.1 * jax.random.normal(ks[1], (R, H, H), jnp.float32)
    bres = 0.1 * jax.random.normal(ks[2], (R, H), jnp.float32)
    wsel = jax.random.normal(ks[3], (T, G), jnp.float32) / G
    wdown = jax.random.normal(ks[4], (A, H), jnp.float32) / jnp.sqrt(H)
    wup = jax.random.normal(ks[5], (H, A), jnp.float32) / jnp.sqrt(A)

    prepared = prepare_weights(wres, bres, wsel, wdown, wup)  # hoisted, one-time
    out = select_k_groups_attn(x, prepared)
    out = jax.block_until_ready(out)

    ref = ref_forward(x, wres, bres, wsel, wdown, wup)
    assert out.shape == (T, B, S, H), out.shape
    if not jnp.allclose(out, ref, rtol=1e-2, atol=1e-2):
        err = float(jnp.max(jnp.abs(out - ref)))
        raise AssertionError(
            f"Pallas kernel output mismatch vs JAX reference (max abs err {err})")
    print("KERNEL_OK")
</pallas_src>

<mosaic_0001>
module attributes {stable_mosaic.version = 11 : i64} {
  func.func @selectk_kernel(%arg0: i32, %arg1: memref<4x16x32xf32, #tpu.memory_space<vmem>>, %arg2: memref<2x32x32xbf16, #tpu.memory_space<vmem>>, %arg3: memref<2x1x32xf32, #tpu.memory_space<vmem>>, %arg4: memref<2x4xf32, #tpu.memory_space<smem>>, %arg5: memref<32x16xbf16, #tpu.memory_space<vmem>>, %arg6: memref<16x32xbf16, #tpu.memory_space<vmem>>, %arg7: memref<2x16x32xf32, #tpu.memory_space<vmem>>, %arg8: memref<32x32xf32, #tpu.memory_space<vmem>>) attributes {dimension_semantics = [#tpu.dimension_semantics<parallel>], iteration_bounds = array<i64: 2>, scalar_prefetch = 0 : i64, scratch_operands = 1 : i64, tpu.core_type = #tpu.core_type<tc>, window_params = [{transform_indices = @transform_0, window_bounds = array<i64: 4, 16, 32>}, {pipeline_mode = #tpu.pipeline_mode<synchronous>, transform_indices = @transform_1, window_bounds = array<i64: 2, 32, 32>}, {pipeline_mode = #tpu.pipeline_mode<synchronous>, transform_indices = @transform_2, window_bounds = array<i64: 2, 1, 32>}, {transform_indices = @transform_3, window_bounds = array<i64: 2, 4>}, {pipeline_mode = #tpu.pipeline_mode<synchronous>, transform_indices = @transform_4, window_bounds = array<i64: 32, 16>}, {pipeline_mode = #tpu.pipeline_mode<synchronous>, transform_indices = @transform_5, window_bounds = array<i64: 16, 32>}, {transform_indices = @transform_6, window_bounds = array<i64: 2, 16, 32>}]} {
    %c0 = arith.constant 0 : index
    %c0_0 = arith.constant 0 : index
    %c0_1 = arith.constant 0 : index
    %0 = vector.load %arg1[%c0, %c0_0, %c0_1] : memref<4x16x32xf32, #tpu.memory_space<vmem>>, vector<4x16x32xf32>
    %1 = vector.shape_cast %0 : vector<4x16x32xf32> to vector<64x32xf32>
    %2 = arith.truncf %1 : vector<64x32xf32> to vector<64x32xbf16>
    %c0_2 = arith.constant 0 : index
    %c0_3 = arith.constant 0 : index
    %c0_4 = arith.constant 0 : index
    %3 = vector.load %arg2[%c0_2, %c0_3, %c0_4] : memref<2x32x32xbf16, #tpu.memory_space<vmem>>, vector<1x32x32xbf16>
    %4 = vector.shape_cast %3 : vector<1x32x32xbf16> to vector<32x32xbf16>
    %cst = arith.constant dense<0.000000e+00> : vector<64x32xf32>
    %5 = tpu.matmul %2, %4, %cst {dimension_numbers = #tpu.dot_dimension_numbers<[1], [0], [0], [1], [0, 0, 1, 1], [], []>} : vector<64x32xbf16>, vector<32x32xbf16>, vector<64x32xf32> -> vector<64x32xf32>
    %c0_5 = arith.constant 0 : index
    %c0_6 = arith.constant 0 : index
    %c0_7 = arith.constant 0 : index
    %6 = vector.load %arg3[%c0_5, %c0_6, %c0_7] : memref<2x1x32xf32, #tpu.memory_space<vmem>>, vector<1x1x32xf32>
    %7 = vector.shape_cast %6 : vector<1x1x32xf32> to vector<1x32xf32>
    %8 = vector.broadcast %7 : vector<1x32xf32> to vector<64x32xf32>
    %9 = arith.addf %5, %8 : vector<64x32xf32>
    %10 = arith.negf %9 : vector<64x32xf32>
    %11 = math.exp %10 : vector<64x32xf32>
    %cst_8 = arith.constant 1.000000e+00 : f32
    %12 = vector.broadcast %cst_8 : f32 to vector<64x32xf32>
    %13 = arith.addf %12, %11 : vector<64x32xf32>
    %14 = arith.divf %12, %13 : vector<64x32xf32>
    %15 = arith.mulf %9, %14 : vector<64x32xf32>
    %16 = arith.addf %1, %15 : vector<64x32xf32>
    %17 = arith.truncf %16 : vector<64x32xf32> to vector<64x32xbf16>
    %c1 = arith.constant 1 : index
    %c0_9 = arith.constant 0 : index
    %c0_10 = arith.constant 0 : index
    %18 = vector.load %arg2[%c1, %c0_9, %c0_10] : memref<2x32x32xbf16, #tpu.memory_space<vmem>>, vector<1x32x32xbf16>
    %19 = vector.shape_cast %18 : vector<1x32x32xbf16> to vector<32x32xbf16>
    %cst_11 = arith.constant dense<0.000000e+00> : vector<64x32xf32>
    %20 = tpu.matmul %17, %19, %cst_11 {dimension_numbers = #tpu.dot_dimension_numbers<[1], [0], [0], [1], [0, 0, 1, 1], [], []>} : vector<64x32xbf16>, vector<32x32xbf16>, vector<64x32xf32> -> vector<64x32xf32>
    %c1_12 = arith.constant 1 : index
    %c0_13 = arith.constant 0 : index
    %c0_14 = arith.constant 0 : index
    %21 = vector.load %arg3[%c1_12, %c0_13, %c0_14] : memref<2x1x32xf32, #tpu.memory_space<vmem>>, vector<1x1x32xf32>
    %22 = vector.shape_cast %21 : vector<1x1x32xf32> to vector<1x32xf32>
    %23 = vector.broadcast %22 : vector<1x32xf32> to vector<64x32xf32>
    %24 = arith.addf %20, %23 : vector<64x32xf32>
    %25 = arith.negf %24 : vector<64x32xf32>
    %26 = math.exp %25 : vector<64x32xf32>
    %cst_15 = arith.constant 1.000000e+00 : f32
    %27 = vector.broadcast %cst_15 : f32 to vector<64x32xf32>
    %28 = arith.addf %27, %26 : vector<64x32xf32>
    %29 = arith.divf %27, %28 : vector<64x32xf32>
    %30 = arith.mulf %24, %29 : vector<64x32xf32>
    %31 = arith.addf %16, %30 : vector<64x32xf32>
    %32 = vector.shape_cast %31 : vector<64x32xf32> to vector<4x16x32xf32>
    %c0_16 = arith.constant 0 : index
    %c0_17 = arith.constant 0 : index
    %33 = memref.load %arg4[%c0_16, %c0_17] : memref<2x4xf32, #tpu.memory_space<smem>>
    %34 = vector.extract_strided_slice %32 {offsets = [0, 0, 0], sizes = [1, 16, 32], strides = [1, 1, 1]} : vector<4x16x32xf32> to vector<1x16x32xf32>
    %35 = vector.shape_cast %34 : vector<1x16x32xf32> to vector<16x32xf32>
    %36 = vector.broadcast %33 : f32 to vector<16x32xf32>
    %37 = arith.mulf %36, %35 : vector<16x32xf32>
    %c0_18 = arith.constant 0 : index
    %c1_19 = arith.constant 1 : index
    %38 = memref.load %arg4[%c0_18, %c1_19] : memref<2x4xf32, #tpu.memory_space<smem>>
    %39 = vector.extract_strided_slice %32 {offsets = [1, 0, 0], sizes = [1, 16, 32], strides = [1, 1, 1]} : vector<4x16x32xf32> to vector<1x16x32xf32>
    %40 = vector.shape_cast %39 : vector<1x16x32xf32> to vector<16x32xf32>
    %41 = vector.broadcast %38 : f32 to vector<16x32xf32>
    %42 = arith.mulf %41, %40 : vector<16x32xf32>
    %43 = arith.addf %37, %42 : vector<16x32xf32>
    %c0_20 = arith.constant 0 : index
    %c2 = arith.constant 2 : index
    %44 = memref.load %arg4[%c0_20, %c2] : memref<2x4xf32, #tpu.memory_space<smem>>
    %45 = vector.extract_strided_slice %32 {offsets = [2, 0, 0], sizes = [1, 16, 32], strides = [1, 1, 1]} : vector<4x16x32xf32> to vector<1x16x32xf32>
    %46 = vector.shape_cast %45 : vector<1x16x32xf32> to vector<16x32xf32>
    %47 = vector.broadcast %44 : f32 to vector<16x32xf32>
    %48 = arith.mulf %47, %46 : vector<16x32xf32>
    %49 = arith.addf %43, %48 : vector<16x32xf32>
    %c0_21 = arith.constant 0 : index
    %c3 = arith.constant 3 : index
    %50 = memref.load %arg4[%c0_21, %c3] : memref<2x4xf32, #tpu.memory_space<smem>>
    %51 = vector.extract_strided_slice %32 {offsets = [3, 0, 0], sizes = [1, 16, 32], strides = [1, 1, 1]} : vector<4x16x32xf32> to vector<1x16x32xf32>
    %52 = vector.shape_cast %51 : vector<1x16x32xf32> to vector<16x32xf32>
    %53 = vector.broadcast %50 : f32 to vector<16x32xf32>
    %54 = arith.mulf %53, %52 : vector<16x32xf32>
    %55 = arith.addf %49, %54 : vector<16x32xf32>
    %c0_22 = arith.constant 0 : index
    %c0_23 = arith.constant 0 : index
    %56 = vector.load %arg8[%c0_22, %c0_23] : memref<32x32xf32, #tpu.memory_space<vmem>>, vector<16x32xf32>
    tpu.vector_store %arg8[%c0_22, %c0_23], %55 {strides = array<i32>} : memref<32x32xf32, #tpu.memory_space<vmem>>, vector<16x32xf32>,
    %c1_24 = arith.constant 1 : index
    %c0_25 = arith.constant 0 : index
    %57 = memref.load %arg4[%c1_24, %c0_25] : memref<2x4xf32, #tpu.memory_space<smem>>
    %58 = vector.extract_strided_slice %32 {offsets = [0, 0, 0], sizes = [1, 16, 32], strides = [1, 1, 1]} : vector<4x16x32xf32> to vector<1x16x32xf32>
    %59 = vector.shape_cast %58 : vector<1x16x32xf32> to vector<16x32xf32>
    %60 = vector.broadcast %57 : f32 to vector<16x32xf32>
    %61 = arith.mulf %60, %59 : vector<16x32xf32>
    %c1_26 = arith.constant 1 : index
    %c1_27 = arith.constant 1 : index
    %62 = memref.load %arg4[%c1_26, %c1_27] : memref<2x4xf32, #tpu.memory_space<smem>>
    %63 = vector.extract_strided_slice %32 {offsets = [1, 0, 0], sizes = [1, 16, 32], strides = [1, 1, 1]} : vector<4x16x32xf32> to vector<1x16x32xf32>
    %64 = vector.shape_cast %63 : vector<1x16x32xf32> to vector<16x32xf32>
    %65 = vector.broadcast %62 : f32 to vector<16x32xf32>
    %66 = arith.mulf %65, %64 : vector<16x32xf32>
    %67 = arith.addf %61, %66 : vector<16x32xf32>
    %c1_28 = arith.constant 1 : index
    %c2_29 = arith.constant 2 : index
    %68 = memref.load %arg4[%c1_28, %c2_29] : memref<2x4xf32, #tpu.memory_space<smem>>
    %69 = vector.extract_strided_slice %32 {offsets = [2, 0, 0], sizes = [1, 16, 32], strides = [1, 1, 1]} : vector<4x16x32xf32> to vector<1x16x32xf32>
    %70 = vector.shape_cast %69 : vector<1x16x32xf32> to vector<16x32xf32>
    %71 = vector.broadcast %68 : f32 to vector<16x32xf32>
    %72 = arith.mulf %71, %70 : vector<16x32xf32>
    %73 = arith.addf %67, %72 : vector<16x32xf32>
    %c1_30 = arith.constant 1 : index
    %c3_31 = arith.constant 3 : index
    %74 = memref.load %arg4[%c1_30, %c3_31] : memref<2x4xf32, #tpu.memory_space<smem>>
    %75 = vector.extract_strided_slice %32 {offsets = [3, 0, 0], sizes = [1, 16, 32], strides = [1, 1, 1]} : vector<4x16x32xf32> to vector<1x16x32xf32>
    %76 = vector.shape_cast %75 : vector<1x16x32xf32> to vector<16x32xf32>
    %77 = vector.broadcast %74 : f32 to vector<16x32xf32>
    %78 = arith.mulf %77, %76 : vector<16x32xf32>
    %79 = arith.addf %73, %78 : vector<16x32xf32>
    %c16 = arith.constant 16 : index
    %c0_32 = arith.constant 0 : index
    %80 = vector.load %arg8[%c16, %c0_32] : memref<32x32xf32, #tpu.memory_space<vmem>>, vector<16x32xf32>
    tpu.vector_store %arg8[%c16, %c0_32], %79 {strides = array<i32>} : memref<32x32xf32, #tpu.memory_space<vmem>>, vector<16x32xf32>,
    %c0_33 = arith.constant 0 : index
    %c0_34 = arith.constant 0 : index
    %81 = vector.load %arg8[%c0_33, %c0_34] : memref<32x32xf32, #tpu.memory_space<vmem>>, vector<32x32xf32>
    %82 = arith.truncf %81 : vector<32x32xf32> to vector<32x32xbf16>
    %c0_35 = arith.constant 0 : index
    %c0_36 = arith.constant 0 : index
    %83 = vector.load %arg5[%c0_35, %c0_36] : memref<32x16xbf16, #tpu.memory_space<vmem>>, vector<32x16xbf16>
    %cst_37 = arith.constant dense<0.000000e+00> : vector<32x16xf32>
    %84 = tpu.matmul %82, %83, %cst_37 {dimension_numbers = #tpu.dot_dimension_numbers<[1], [0], [0], [1], [0, 0, 1, 1], [], []>} : vector<32x32xbf16>, vector<32x16xbf16>, vector<32x16xf32> -> vector<32x16xf32>
    %85 = arith.truncf %84 : vector<32x16xf32> to vector<32x16xbf16>
    %c0_38 = arith.constant 0 : index
    %c0_39 = arith.constant 0 : index
    %86 = vector.load %arg6[%c0_38, %c0_39] : memref<16x32xbf16, #tpu.memory_space<vmem>>, vector<16x32xbf16>
    %cst_40 = arith.constant dense<0.000000e+00> : vector<32x32xf32>
    %87 = tpu.matmul %85, %86, %cst_40 {dimension_numbers = #tpu.dot_dimension_numbers<[1], [0], [0], [1], [0, 0, 1, 1], [], []>} : vector<32x16xbf16>, vector<16x32xbf16>, vector<32x32xf32> -> vector<32x32xf32>
    %88 = vector.shape_cast %87 : vector<32x32xf32> to vector<2x16x32xf32>
    %c0_41 = arith.constant 0 : index
    %c0_42 = arith.constant 0 : index
    %c0_43 = arith.constant 0 : index
    %89 = vector.load %arg7[%c0_41, %c0_42, %c0_43] : memref<2x16x32xf32, #tpu.memory_space<vmem>>, vector<2x16x32xf32>
    tpu.vector_store %arg7[%c0_41, %c0_42, %c0_43], %88 {strides = array<i32>} : memref<2x16x32xf32, #tpu.memory_space<vmem>>, vector<2x16x32xf32>,
    return
  }
  func.func @transform_0(%arg0: i32) -> (i32, i32, i32) {
    %c0_i32 = arith.constant 0 : i32
    %c0_i32_0 = arith.constant 0 : i32
    %c0_i32_1 = arith.constant 0 : i32
    return %c0_i32, %arg0, %c0_i32_0 : i32, i32, i32
  }
  func.func @transform_1(%arg0: i32) -> (i32, i32, i32) {
    %c0_i32 = arith.constant 0 : i32
    %c0_i32_0 = arith.constant 0 : i32
    %c0_i32_1 = arith.constant 0 : i32
    %c0_i32_2 = arith.constant 0 : i32
    return %c0_i32, %c0_i32_0, %c0_i32_1 : i32, i32, i32
  }
  func.func @transform_2(%arg0: i32) -> (i32, i32, i32) {
    %c0_i32 = arith.constant 0 : i32
    %c0_i32_0 = arith.constant 0 : i32
    %c0_i32_1 = arith.constant 0 : i32
    %c0_i32_2 = arith.constant 0 : i32
    return %c0_i32, %c0_i32_0, %c0_i32_1 : i32, i32, i32
  }
  func.func @transform_3(%arg0: i32) -> (i32, i32) {
    %c0_i32 = arith.constant 0 : i32
    %c0_i32_0 = arith.constant 0 : i32
    %c0_i32_1 = arith.constant 0 : i32
    return %c0_i32, %c0_i32_0 : i32, i32
  }
  func.func @transform_4(%arg0: i32) -> (i32, i32) {
    %c0_i32 = arith.constant 0 : i32
    %c0_i32_0 = arith.constant 0 : i32
    %c0_i32_1 = arith.constant 0 : i32
    return %c0_i32, %c0_i32_0 : i32, i32
  }
  func.func @transform_5(%arg0: i32) -> (i32, i32) {
    %c0_i32 = arith.constant 0 : i32
    %c0_i32_0 = arith.constant 0 : i32
    %c0_i32_1 = arith.constant 0 : i32
    return %c0_i32, %c0_i32_0 : i32, i32
  }
  func.func @transform_6(%arg0: i32) -> (i32, i32, i32) {
    %c0_i32 = arith.constant 0 : i32
    %c0_i32_0 = arith.constant 0 : i32
    %c0_i32_1 = arith.constant 0 : i32
    return %c0_i32, %arg0, %c0_i32_0 : i32, i32, i32
  }
}

module attributes {stable_mosaic.version = 11 : i64} {
  func.func @selectk_kernel(%arg0: i32, %arg1: memref<4x16x32xf32, #tpu.memory_space<vmem>>, %arg2: memref<2x32x32xbf16, #tpu.memory_space<vmem>>, %arg3: memref<2x1x32xf32, #tpu.memory_space<vmem>>, %arg4: memref<2x4xf32, #tpu.memory_space<smem>>, %arg5: memref<32x16xbf16, #tpu.memory_space<vmem>>, %arg6: memref<16x32xbf16, #tpu.memory_space<vmem>>, %arg7: memref<2x16x32xf32, #tpu.memory_space<vmem>>, %arg8: memref<32x32xf32, #tpu.memory_space<vmem>>) attributes {dimension_semantics = [#tpu.dimension_semantics<parallel>], iteration_bounds = array<i64: 2>, scalar_prefetch = 0 : i64, scratch_operands = 1 : i64, tpu.core_type = #tpu.core_type<tc>, window_params = [{transform_indices = @transform_0, window_bounds = array<i64: 4, 16, 32>}, {pipeline_mode = #tpu.pipeline_mode<synchronous>, transform_indices = @transform_1, window_bounds = array<i64: 2, 32, 32>}, {pipeline_mode = #tpu.pipeline_mode<synchronous>, transform_indices = @transform_2, window_bounds = array<i64: 2, 1, 32>}, {transform_indices = @transform_3, window_bounds = array<i64: 2, 4>}, {pipeline_mode = #tpu.pipeline_mode<synchronous>, transform_indices = @transform_4, window_bounds = array<i64: 32, 16>}, {pipeline_mode = #tpu.pipeline_mode<synchronous>, transform_indices = @transform_5, window_bounds = array<i64: 16, 32>}, {transform_indices = @transform_6, window_bounds = array<i64: 2, 16, 32>}]} {
    %c0 = arith.constant 0 : index
    %c0_0 = arith.constant 0 : index
    %c0_1 = arith.constant 0 : index
    %0 = vector.load %arg1[%c0, %c0_0, %c0_1] : memref<4x16x32xf32, #tpu.memory_space<vmem>>, vector<4x16x32xf32>
    %1 = vector.shape_cast %0 : vector<4x16x32xf32> to vector<64x32xf32>
    %2 = arith.truncf %1 : vector<64x32xf32> to vector<64x32xbf16>
    %c0_2 = arith.constant 0 : index
    %c0_3 = arith.constant 0 : index
    %c0_4 = arith.constant 0 : index
    %3 = vector.load %arg2[%c0_2, %c0_3, %c0_4] : memref<2x32x32xbf16, #tpu.memory_space<vmem>>, vector<1x32x32xbf16>
    %4 = vector.shape_cast %3 : vector<1x32x32xbf16> to vector<32x32xbf16>
    %cst = arith.constant dense<0.000000e+00> : vector<64x32xf32>
    %5 = tpu.matmul %2, %4, %cst {dimension_numbers = #tpu.dot_dimension_numbers<[1], [0], [0], [1], [0, 0, 1, 1], [], []>} : vector<64x32xbf16>, vector<32x32xbf16>, vector<64x32xf32> -> vector<64x32xf32>
    %c0_5 = arith.constant 0 : index
    %c0_6 = arith.constant 0 : index
    %c0_7 = arith.constant 0 : index
    %6 = vector.load %arg3[%c0_5, %c0_6, %c0_7] : memref<2x1x32xf32, #tpu.memory_space<vmem>>, vector<1x1x32xf32>
    %7 = vector.shape_cast %6 : vector<1x1x32xf32> to vector<1x32xf32>
    %8 = vector.broadcast %7 : vector<1x32xf32> to vector<64x32xf32>
    %9 = arith.addf %5, %8 : vector<64x32xf32>
    %10 = arith.negf %9 : vector<64x32xf32>
    %11 = math.exp %10 : vector<64x32xf32>
    %cst_8 = arith.constant 1.000000e+00 : f32
    %12 = vector.broadcast %cst_8 : f32 to vector<64x32xf32>
    %13 = arith.addf %12, %11 : vector<64x32xf32>
    %14 = arith.divf %12, %13 : vector<64x32xf32>
    %15 = arith.mulf %9, %14 : vector<64x32xf32>
    %16 = arith.addf %1, %15 : vector<64x32xf32>
    %17 = arith.truncf %16 : vector<64x32xf32> to vector<64x32xbf16>
    %c1 = arith.constant 1 : index
    %c0_9 = arith.constant 0 : index
    %c0_10 = arith.constant 0 : index
    %18 = vector.load %arg2[%c1, %c0_9, %c0_10] : memref<2x32x32xbf16, #tpu.memory_space<vmem>>, vector<1x32x32xbf16>
    %19 = vector.shape_cast %18 : vector<1x32x32xbf16> to vector<32x32xbf16>
    %cst_11 = arith.constant dense<0.000000e+00> : vector<64x32xf32>
    %20 = tpu.matmul %17, %19, %cst_11 {dimension_numbers = #tpu.dot_dimension_numbers<[1], [0], [0], [1], [0, 0, 1, 1], [], []>} : vector<64x32xbf16>, vector<32x32xbf16>, vector<64x32xf32> -> vector<64x32xf32>
    %c1_12 = arith.constant 1 : index
    %c0_13 = arith.constant 0 : index
    %c0_14 = arith.constant 0 : index
    %21 = vector.load %arg3[%c1_12, %c0_13, %c0_14] : memref<2x1x32xf32, #tpu.memory_space<vmem>>, vector<1x1x32xf32>
    %22 = vector.shape_cast %21 : vector<1x1x32xf32> to vector<1x32xf32>
    %23 = vector.broadcast %22 : vector<1x32xf32> to vector<64x32xf32>
    %24 = arith.addf %20, %23 : vector<64x32xf32>
    %25 = arith.negf %24 : vector<64x32xf32>
    %26 = math.exp %25 : vector<64x32xf32>
    %cst_15 = arith.constant 1.000000e+00 : f32
    %27 = vector.broadcast %cst_15 : f32 to vector<64x32xf32>
    %28 = arith.addf %27, %26 : vector<64x32xf32>
    %29 = arith.divf %27, %28 : vector<64x32xf32>
    %30 = arith.mulf %24, %29 : vector<64x32xf32>
    %31 = arith.addf %16, %30 : vector<64x32xf32>
    %32 = vector.shape_cast %31 : vector<64x32xf32> to vector<4x16x32xf32>
    %c0_16 = arith.constant 0 : index
    %c0_17 = arith.constant 0 : index
    %33 = memref.load %arg4[%c0_16, %c0_17] : memref<2x4xf32, #tpu.memory_space<smem>>
    %34 = vector.extract_strided_slice %32 {offsets = [0, 0, 0], sizes = [1, 16, 32], strides = [1, 1, 1]} : vector<4x16x32xf32> to vector<1x16x32xf32>
    %35 = vector.shape_cast %34 : vector<1x16x32xf32> to vector<16x32xf32>
    %36 = vector.broadcast %33 : f32 to vector<16x32xf32>
    %37 = arith.mulf %36, %35 : vector<16x32xf32>
    %c0_18 = arith.constant 0 : index
    %c1_19 = arith.constant 1 : index
    %38 = memref.load %arg4[%c0_18, %c1_19] : memref<2x4xf32, #tpu.memory_space<smem>>
    %39 = vector.extract_strided_slice %32 {offsets = [1, 0, 0], sizes = [1, 16, 32], strides = [1, 1, 1]} : vector<4x16x32xf32> to vector<1x16x32xf32>
    %40 = vector.shape_cast %39 : vector<1x16x32xf32> to vector<16x32xf32>
    %41 = vector.broadcast %38 : f32 to vector<16x32xf32>
    %42 = arith.mulf %41, %40 : vector<16x32xf32>
    %43 = arith.addf %37, %42 : vector<16x32xf32>
    %c0_20 = arith.constant 0 : index
    %c2 = arith.constant 2 : index
    %44 = memref.load %arg4[%c0_20, %c2] : memref<2x4xf32, #tpu.memory_space<smem>>
    %45 = vector.extract_strided_slice %32 {offsets = [2, 0, 0], sizes = [1, 16, 32], strides = [1, 1, 1]} : vector<4x16x32xf32> to vector<1x16x32xf32>
    %46 = vector.shape_cast %45 : vector<1x16x32xf32> to vector<16x32xf32>
    %47 = vector.broadcast %44 : f32 to vector<16x32xf32>
    %48 = arith.mulf %47, %46 : vector<16x32xf32>
    %49 = arith.addf %43, %48 : vector<16x32xf32>
    %c0_21 = arith.constant 0 : index
    %c3 = arith.constant 3 : index
    %50 = memref.load %arg4[%c0_21, %c3] : memref<2x4xf32, #tpu.memory_space<smem>>
    %51 = vector.extract_strided_slice %32 {offsets = [3, 0, 0], sizes = [1, 16, 32], strides = [1, 1, 1]} : vector<4x16x32xf32> to vector<1x16x32xf32>
    %52 = vector.shape_cast %51 : vector<1x16x32xf32> to vector<16x32xf32>
    %53 = vector.broadcast %50 : f32 to vector<16x32xf32>
    %54 = arith.mulf %53, %52 : vector<16x32xf32>
    %55 = arith.addf %49, %54 : vector<16x32xf32>
    %c0_22 = arith.constant 0 : index
    %c0_23 = arith.constant 0 : index
    %56 = vector.load %arg8[%c0_22, %c0_23] : memref<32x32xf32, #tpu.memory_space<vmem>>, vector<16x32xf32>
    tpu.vector_store %arg8[%c0_22, %c0_23], %55 {strides = array<i32>} : memref<32x32xf32, #tpu.memory_space<vmem>>, vector<16x32xf32>,
    %c1_24 = arith.constant 1 : index
    %c0_25 = arith.constant 0 : index
    %57 = memref.load %arg4[%c1_24, %c0_25] : memref<2x4xf32, #tpu.memory_space<smem>>
    %58 = vector.extract_strided_slice %32 {offsets = [0, 0, 0], sizes = [1, 16, 32], strides = [1, 1, 1]} : vector<4x16x32xf32> to vector<1x16x32xf32>
    %59 = vector.shape_cast %58 : vector<1x16x32xf32> to vector<16x32xf32>
    %60 = vector.broadcast %57 : f32 to vector<16x32xf32>
    %61 = arith.mulf %60, %59 : vector<16x32xf32>
    %c1_26 = arith.constant 1 : index
    %c1_27 = arith.constant 1 : index
    %62 = memref.load %arg4[%c1_26, %c1_27] : memref<2x4xf32, #tpu.memory_space<smem>>
    %63 = vector.extract_strided_slice %32 {offsets = [1, 0, 0], sizes = [1, 16, 32], strides = [1, 1, 1]} : vector<4x16x32xf32> to vector<1x16x32xf32>
    %64 = vector.shape_cast %63 : vector<1x16x32xf32> to vector<16x32xf32>
    %65 = vector.broadcast %62 : f32 to vector<16x32xf32>
    %66 = arith.mulf %65, %64 : vector<16x32xf32>
    %67 = arith.addf %61, %66 : vector<16x32xf32>
    %c1_28 = arith.constant 1 : index
    %c2_29 = arith.constant 2 : index
    %68 = memref.load %arg4[%c1_28, %c2_29] : memref<2x4xf32, #tpu.memory_space<smem>>
    %69 = vector.extract_strided_slice %32 {offsets = [2, 0, 0], sizes = [1, 16, 32], strides = [1, 1, 1]} : vector<4x16x32xf32> to vector<1x16x32xf32>
    %70 = vector.shape_cast %69 : vector<1x16x32xf32> to vector<16x32xf32>
    %71 = vector.broadcast %68 : f32 to vector<16x32xf32>
    %72 = arith.mulf %71, %70 : vector<16x32xf32>
    %73 = arith.addf %67, %72 : vector<16x32xf32>
    %c1_30 = arith.constant 1 : index
    %c3_31 = arith.constant 3 : index
    %74 = memref.load %arg4[%c1_30, %c3_31] : memref<2x4xf32, #tpu.memory_space<smem>>
    %75 = vector.extract_strided_slice %32 {offsets = [3, 0, 0], sizes = [1, 16, 32], strides = [1, 1, 1]} : vector<4x16x32xf32> to vector<1x16x32xf32>
    %76 = vector.shape_cast %75 : vector<1x16x32xf32> to vector<16x32xf32>
    %77 = vector.broadcast %74 : f32 to vector<16x32xf32>
    %78 = arith.mulf %77, %76 : vector<16x32xf32>
    %79 = arith.addf %73, %78 : vector<16x32xf32>
    %c16 = arith.constant 16 : index
    %c0_32 = arith.constant 0 : index
    %80 = vector.load %arg8[%c16, %c0_32] : memref<32x32xf32, #tpu.memory_space<vmem>>, vector<16x32xf32>
    tpu.vector_store %arg8[%c16, %c0_32], %79 {strides = array<i32>} : memref<32x32xf32, #tpu.memory_space<vmem>>, vector<16x32xf32>,
    %c0_33 = arith.constant 0 : index
    %c0_34 = arith.constant 0 : index
    %81 = vector.load %arg8[%c0_33, %c0_34] : memref<32x32xf32, #tpu.memory_space<vmem>>, vector<32x32xf32>
    %82 = arith.truncf %81 : vector<32x32xf32> to vector<32x32xbf16>
    %c0_35 = arith.constant 0 : index
    %c0_36 = arith.constant 0 : index
    %83 = vector.load %arg5[%c0_35, %c0_36] : memref<32x16xbf16, #tpu.memory_space<vmem>>, vector<32x16xbf16>
    %cst_37 = arith.constant dense<0.000000e+00> : vector<32x16xf32>
    %84 = tpu.matmul %82, %83, %cst_37 {dimension_numbers = #tpu.dot_dimension_numbers<[1], [0], [0], [1], [0, 0, 1, 1], [], []>} : vector<32x32xbf16>, vector<32x16xbf16>, vector<32x16xf32> -> vector<32x16xf32>
    %85 = arith.truncf %84 : vector<32x16xf32> to vector<32x16xbf16>
    %c0_38 = arith.constant 0 : index
    %c0_39 = arith.constant 0 : index
    %86 = vector.load %arg6[%c0_38, %c0_39] : memref<16x32xbf16, #tpu.memory_space<vmem>>, vector<16x32xbf16>
    %cst_40 = arith.constant dense<0.000000e+00> : vector<32x32xf32>
    %87 = tpu.matmul %85, %86, %cst_40 {dimension_numbers = #tpu.dot_dimension_numbers<[1], [0], [0], [1], [0, 0, 1, 1], [], []>} : vector<32x16xbf16>, vector<16x32xbf16>, vector<32x32xf32> -> vector<32x32xf32>
    %88 = vector.shape_cast %87 : vector<32x32xf32> to vector<2x16x32xf32>
    %c0_41 = arith.constant 0 : index
    %c0_42 = arith.constant 0 : index
    %c0_43 = arith.constant 0 : index
    %89 = vector.load %arg7[%c0_41, %c0_42, %c0_43] : memref<2x16x32xf32, #tpu.memory_space<vmem>>, vector<2x16x32xf32>
    tpu.vector_store %arg7[%c0_41, %c0_42, %c0_43], %88 {strides = array<i32>} : memref<2x16x32xf32, #tpu.memory_space<vmem>>, vector<2x16x32xf32>,
    return
  }
  func.func @transform_0(%arg0: i32) -> (i32, i32, i32) {
    %c0_i32 = arith.constant 0 : i32
    %c0_i32_0 = arith.constant 0 : i32
    %c0_i32_1 = arith.constant 0 : i32
    return %c0_i32, %arg0, %c0_i32_0 : i32, i32, i32
  }
  func.func @transform_1(%arg0: i32) -> (i32, i32, i32) {
    %c0_i32 = arith.constant 0 : i32
    %c0_i32_0 = arith.constant 0 : i32
    %c0_i32_1 = arith.constant 0 : i32
    %c0_i32_2 = arith.constant 0 : i32
    return %c0_i32, %c0_i32_0, %c0_i32_1 : i32, i32, i32
  }
  func.func @transform_2(%arg0: i32) -> (i32, i32, i32) {
    %c0_i32 = arith.constant 0 : i32
    %c0_i32_0 = arith.constant 0 : i32
    %c0_i32_1 = arith.constant 0 : i32
    %c0_i32_2 = arith.constant 0 : i32
    return %c0_i32, %c0_i32_0, %c0_i32_1 : i32, i32, i32
  }
  func.func @transform_3(%arg0: i32) -> (i32, i32) {
    %c0_i32 = arith.constant 0 : i32
    %c0_i32_0 = arith.constant 0 : i32
    %c0_i32_1 = arith.constant 0 : i32
    return %c0_i32, %c0_i32_0 : i32, i32
  }
  func.func @transform_4(%arg0: i32) -> (i32, i32) {
    %c0_i32 = arith.constant 0 : i32
    %c0_i32_0 = arith.constant 0 : i32
    %c0_i32_1 = arith.constant 0 : i32
    return %c0_i32, %c0_i32_0 : i32, i32
  }
  func.func @transform_5(%arg0: i32) -> (i32, i32) {
    %c0_i32 = arith.constant 0 : i32
    %c0_i32_0 = arith.constant 0 : i32
    %c0_i32_1 = arith.constant 0 : i32
    return %c0_i32, %c0_i32_0 : i32, i32
  }
  func.func @transform_6(%arg0: i32) -> (i32, i32, i32) {
    %c0_i32 = arith.constant 0 : i32
    %c0_i32_0 = arith.constant 0 : i32
    %c0_i32_1 = arith.constant 0 : i32
    return %c0_i32, %arg0, %c0_i32_0 : i32, i32, i32
  }
}

</mosaic_0001>

<llo_original>
// kernel: tpu_custom_call.1
$region0: #{tpu_custom_call.1}
  #allocation0 [shape = 'u32[]', space=smem, size = 0x4, offset = 0x4, fixed_abs, tag = 'smem constant byte address 0x4 - core index']
  #allocation1 [shape = 'u32[72,128]{1,0:T(1,128)}', space=vmem, size = 0x9000, scoped, tag = 'internal scratch']
  #allocation2 [shape = 'f32[32,32]{1,0:T(8,128)}', space=vmem, size = 0x4000, scoped, tag = 'scratch operand']
  #allocation11 [shape = 's32[]', space=sflag, size = 0x4, offset = 0, fixed_abs, tag = 'sflag constant byte address 0x0 - dummy sync flag']
  #allocation13 [shape = 's32[]', space=sflag, size = 0x4, offset = 0, fixed_abs, tag = 'sflag constant byte address 0x0 - dummy sync flag']
  %s0 = inlined_call_operand.hbm [shape: f32[4,32,32], index: 0, kind: input, shape index: {}]
  %s1 = inlined_call_operand.hbm [shape: bf16[2,32,32], index: 1, kind: input, shape index: {}]
  %s2 = inlined_call_operand.vmem [shape: f32[2,1,32], index: 2, kind: input, shape index: {}]
  %s3 = inlined_call_operand.vmem [shape: f32[2,4], index: 3, kind: input, shape index: {}]
  %s4 = inlined_call_operand.vmem [shape: bf16[32,16], index: 4, kind: input, shape index: {}]
  %s5 = inlined_call_operand.vmem [shape: bf16[16,32], index: 5, kind: input, shape index: {}]
  %s6 = inlined_call_operand.hbm [shape: f32[2,32,32], index: 6, kind: output, shape index: {}]
  %s7 = sld [smem:[#allocation0]]
  $region69: #{tpu_custom_call.1} parent=0
    _
  %s9 = ssub.s32 1, %s7
  %s10 = scalar_select 0, %s9, %s7
  $region1: #{tpu_custom_call.1} parent=0
    #allocation3 [shape = 'u8[65536]{0}', space=vmem, size = 0x10000, scoped, tag = 'input window, operand 0']
    #allocation4 [shape = 's32[2]{0}', space=sflag, size = 0x8, scoped, tag = 'scoped memory for tpu_custom_call.1']
    #allocation5 [shape = 's32[2]{0}', space=sflag, size = 0x8, scoped, tag = 'scoped memory for tpu_custom_call.1']
    #allocation6 [shape = 's32[2]{0}', space=sflag, size = 0x8, scoped, tag = 'scoped memory for tpu_custom_call.1']
    #allocation7 [shape = 'u8[16384]{0}', space=vmem, size = 0x4000, scoped, tag = 'input window, operand 1, single buffered']
    #allocation8 [shape = 's32[1]{0}', space=sflag, size = 0x4, scoped, tag = 'scoped memory for tpu_custom_call.1']
    #allocation9 [shape = 'u8[1024]{0}', space=smem, size = 0x400, scoped, tag = 'input window, operand 3, single buffered']
    #allocation10 [shape = 'u8[32768]{0}', space=vmem, size = 0x8000, scoped, tag = 'output window, operand 0']
    %11 = vsyncpa [#allocation4], 0
    %s12 = scalar_lea.sflag [#allocation4], 1
    %13 = vsyncpa %s12, 0
    %14 = vsyncpa [#allocation8], 0
    %15 = vsyncpa [#allocation6], 0
    %16 = vsyncpa [#allocation5], 0
    %s17 = scalar_lea.sflag [#allocation5], 1
    %18 = vsyncpa %s17, 0
    loop: start=0, step=1, limit=4
    $region2: #{tpu_custom_call.1} parent=1 // loop_pre_header
      _
    $region3: #{tpu_custom_call.1} parent=1 // loop_header
      %s20 = sphi 0, %s24
      %p21 = scmp.ge.s32.totalorder %s20, 4
      %s30 = sphi 0, %s32
      %s33 = sphi 0, %s30
      %s34 = sphi 0, %s33
      %s50 = sphi 0, %s34
      %s54 = sphi 0, %s54
      %s56 = sphi 0, %s54
      %s57 = sphi 0, %s56
      %s71 = sphi 0, %s57
      %s75 = sphi 0, %s75
      %s77 = sphi 0, %s75
      %s78 = sphi 0, %s77
      %s92 = sphi 0, %s78
      %s96 = sphi 0, %s96
      %s98 = sphi 0, %s96
      %s99 = sphi 0, %s98
      %s113 = sphi 0, %s99
      %s117 = sphi 0, %s117
      %s119 = sphi 0, %s117
      %s120 = sphi 0, %s119
      %s134 = sphi 0, %s120
      %s138 = sphi 0, %s138
      %s140 = sphi 0, %s138
      %s141 = sphi 0, %s140
      %s155 = sphi 0, %s141
      %s161 = sphi 0, %s163
      %s164 = sphi 0, %s161
      %s165 = sphi 0, %s164
      %s181 = sphi 0, %s165
    $region4: #{tpu_custom_call.1} parent=1 // loop_header_branch
      %23 = sbr.rel (%p21) target = $region8
    $region5: #{tpu_custom_call.1} parent=1 // loop_body
      %s25 = ssub.s32 %s20, 1
      %s26 = ssub.s32 %s20, 2
      %s27 = sadd.s32 %s20, 1
      %s28 = ssub.s32 %s20, %s27
      %p29 = scmp.eq.s32.totalorder %s28, 0
      %s31 = sadd.s32 %s30, 1
      %s32 = scalar_select %p29, %s30, %s31
      %p35 = pneg %p29
      %p36 = scmp.eq.s32.totalorder %s20, 1
      %p37 = por %p35, %p36
      %p38 = scmp.ne.s32.totalorder %s30, %s33
      %p39 = scmp.eq.s32.totalorder %s20, 0
      %p40 = por %p38, %p39
      %p41 = scmp.ne.s32.totalorder %s30, %s33
      %p42 = scmp.eq.s32.totalorder %s25, 1
      %p43 = por %p41, %p42
      %p44 = scmp.ne.s32.totalorder %s33, %s34
      %p45 = scmp.eq.s32.totalorder %s25, 0
      %p46 = por %p44, %p45
      %p47 = scmp.ne.s32.totalorder %s33, %s34
      %p48 = scmp.eq.s32.totalorder %s26, 1
      %p49 = por %p47, %p48
      %p51 = scmp.ne.s32.totalorder %s34, %s50
      %p52 = scmp.eq.s32.totalorder %s26, 0
      %p53 = por %p51, %p52
      %s55 = sadd.s32 %s54, 1
      %p58 = scmp.eq.s32.totalorder %s20, 1
      %p59 = scmp.ne.s32.totalorder %s54, %s56
      %p60 = scmp.eq.s32.totalorder %s20, 0
      %p61 = por %p59, %p60
      %p62 = scmp.ne.s32.totalorder %s54, %s56
      %p63 = scmp.eq.s32.totalorder %s25, 1
      %p64 = por %p62, %p63
      %p65 = scmp.ne.s32.totalorder %s56, %s57
      %p66 = scmp.eq.s32.totalorder %s25, 0
      %p67 = por %p65, %p66
      %p68 = scmp.ne.s32.totalorder %s56, %s57
      %p69 = scmp.eq.s32.totalorder %s26, 1
      %p70 = por %p68, %p69
      %p72 = scmp.ne.s32.totalorder %s57, %s71
      %p73 = scmp.eq.s32.totalorder %s26, 0
      %p74 = por %p72, %p73
      %s76 = sadd.s32 %s75, 1
      %p79 = scmp.eq.s32.totalorder %s20, 1
      %p80 = scmp.ne.s32.totalorder %s75, %s77
      %p81 = scmp.eq.s32.totalorder %s20, 0
      %p82 = por %p80, %p81
      %p83 = scmp.ne.s32.totalorder %s75, %s77
      %p84 = scmp.eq.s32.totalorder %s25, 1
      %p85 = por %p83, %p84
      %p86 = scmp.ne.s32.totalorder %s77, %s78
      %p87 = scmp.eq.s32.totalorder %s25, 0
      %p88 = por %p86, %p87
      %p89 = scmp.ne.s32.totalorder %s77, %s78
      %p90 = scmp.eq.s32.totalorder %s26, 1
      %p91 = por %p89, %p90
      %p93 = scmp.ne.s32.totalorder %s78, %s92
      %p94 = scmp.eq.s32.totalorder %s26, 0
      %p95 = por %p93, %p94
      %s97 = sadd.s32 %s96, 1
      %p100 = scmp.eq.s32.totalorder %s20, 1
      %p101 = scmp.ne.s32.totalorder %s96, %s98
      %p102 = scmp.eq.s32.totalorder %s20, 0
      %p103 = por %p101, %p102
      %p104 = scmp.ne.s32.totalorder %s96, %s98
      %p105 = scmp.eq.s32.totalorder %s25, 1
      %p106 = por %p104, %p105
      %p107 = scmp.ne.s32.totalorder %s98, %s99
      %p108 = scmp.eq.s32.totalorder %s25, 0
      %p109 = por %p107, %p108
      %p110 = scmp.ne.s32.totalorder %s98, %s99
      %p111 = scmp.eq.s32.totalorder %s26, 1
      %p112 = por %p110, %p111
      %p114 = scmp.ne.s32.totalorder %s99, %s113
      %p115 = scmp.eq.s32.totalorder %s26, 0
      %p116 = por %p114, %p115
      %s118 = sadd.s32 %s117, 1
      %p121 = scmp.eq.s32.totalorder %s20, 1
      %p122 = scmp.ne.s32.totalorder %s117, %s119
      %p123 = scmp.eq.s32.totalorder %s20, 0
      %p124 = por %p122, %p123
      %p125 = scmp.ne.s32.totalorder %s117, %s119
      %p126 = scmp.eq.s32.totalorder %s25, 1
      %p127 = por %p125, %p126
      %p128 = scmp.ne.s32.totalorder %s119, %s120
      %p129 = scmp.eq.s32.totalorder %s25, 0
      %p130 = por %p128, %p129
      %p131 = scmp.ne.s32.totalorder %s119, %s120
      %p132 = scmp.eq.s32.totalorder %s26, 1
      %p133 = por %p131, %p132
      %p135 = scmp.ne.s32.totalorder %s120, %s134
      %p136 = scmp.eq.s32.totalorder %s26, 0
      %p137 = por %p135, %p136
      %s139 = sadd.s32 %s138, 1
      %p142 = scmp.eq.s32.totalorder %s20, 1
      %p143 = scmp.ne.s32.totalorder %s138, %s140
      %p144 = scmp.eq.s32.totalorder %s20, 0
      %p145 = por %p143, %p144
      %p146 = scmp.ne.s32.totalorder %s138, %s140
      %p147 = scmp.eq.s32.totalorder %s25, 1
      %p148 = por %p146, %p147
      %p149 = scmp.ne.s32.totalorder %s140, %s141
      %p150 = scmp.eq.s32.totalorder %s25, 0
      %p151 = por %p149, %p150
      %p152 = scmp.ne.s32.totalorder %s140, %s141
      %p153 = scmp.eq.s32.totalorder %s26, 1
      %p154 = por %p152, %p153
      %p156 = scmp.ne.s32.totalorder %s141, %s155
      %p157 = scmp.eq.s32.totalorder %s26, 0
      %p158 = por %p156, %p157
      %s159 = ssub.s32 %s20, %s27
      %p160 = scmp.eq.s32.totalorder %s159, 0
      %s162 = sadd.s32 %s161, 1
      %s163 = scalar_select %p160, %s161, %s162
      %p166 = pneg %p160
      %p167 = scmp.eq.s32.totalorder %s20, 1
      %p168 = por %p166, %p167
      %p169 = scmp.ne.s32.totalorder %s161, %s164
      %p170 = scmp.eq.s32.totalorder %s20, 0
      %p171 = por %p169, %p170
      %p172 = scmp.ne.s32.totalorder %s161, %s164
      %p173 = scmp.eq.s32.totalorder %s25, 1
      %p174 = por %p172, %p173
      %p175 = scmp.ne.s32.totalorder %s164, %s165
      %p176 = scmp.eq.s32.totalorder %s25, 0
      %p177 = por %p175, %p176
      %p178 = scmp.ne.s32.totalorder %s164, %s165
      %p179 = scmp.eq.s32.totalorder %s26, 1
      %p180 = por %p178, %p179
      %p182 = scmp.ne.s32.totalorder %s165, %s181
      %p183 = scmp.eq.s32.totalorder %s26, 0
      %p184 = por %p182, %p183
      %p185 = scmp.le.s32.totalorder 1, %s20
      %p186 = scmp.lt.s32.totalorder %s20, 3
      %p187 = pnand %p185, %p186
      %p188 = pneg %p187
      // Predicated region
      $region9: #{tpu_custom_call.1} parent=5 // pred_check
        _
      $region10: #{tpu_custom_call.1} parent=5 // pred_check_branch
        %190 = sbr.rel (%p187) target = $region12
      $region11: #{tpu_custom_call.1} parent=5 // pred_region
        %s191 = ssub.s32 %s20, 1
        // Predicated region
        $region13: #{tpu_custom_call.1} parent=11 // pred_check
          %p192 = pneg %p67
        $region14: #{tpu_custom_call.1} parent=11 // pred_check_branch
          %194 = sbr.rel (%p192) target = $region16
        $region15: #{tpu_custom_call.1} parent=11 // pred_region
          %196 = vsyncadd [#allocation8], 0
          %s197 = sshll.u32 %s1, 4
          %s198 = int_to_ptr.hbm [resolvable:$true] %s197
          %s199 = sshll.u32 [#allocation7], 4
          %s200 = int_to_ptr.vmem [resolvable:$true] %s199
          %205 = dma.hbm_to_vmem [thread:$0]  %s198, 512, %s200, [#allocation8], 64, 64, 4
        $region16: #{tpu_custom_call.1} parent=11 // pred_fallthru
          _
        // Predicated region
        $region17: #{tpu_custom_call.1} parent=11 // pred_check
          %p206 = pneg %p88
        $region18: #{tpu_custom_call.1} parent=11 // pred_check_branch
          %208 = sbr.rel (%p206) target = $region20
        $region19: #{tpu_custom_call.1} parent=11 // pred_region
          _
        $region20: #{tpu_custom_call.1} parent=11 // pred_fallthru
          _
        // Predicated region
        $region21: #{tpu_custom_call.1} parent=11 // pred_check
          %p209 = pneg %p109
        $region22: #{tpu_custom_call.1} parent=11 // pred_check_branch
          %211 = sbr.rel (%p209) target = $region24
        $region23: #{tpu_custom_call.1} parent=11 // pred_region
          %213 = vsyncadd [#allocation6], 0
          %s215 = sshll.u32 %s3, 4
          %s216 = int_to_ptr.vmem [resolvable:$true] %s215
          %218 = dma.vmem_to_smem %s216, 32, [#allocation9], [#allocation6]
        $region24: #{tpu_custom_call.1} parent=11 // pred_fallthru
          _
        // Predicated region
        $region25: #{tpu_custom_call.1} parent=11 // pred_check
          %p219 = pneg %p130
        $region26: #{tpu_custom_call.1} parent=11 // pred_check_branch
          %221 = sbr.rel (%p219) target = $region28
        $region27: #{tpu_custom_call.1} parent=11 // pred_region
          _
        $region28: #{tpu_custom_call.1} parent=11 // pred_fallthru
          _
        // Predicated region
        $region29: #{tpu_custom_call.1} parent=11 // pred_check
          %p222 = pneg %p151
        $region30: #{tpu_custom_call.1} parent=11 // pred_check_branch
          %224 = sbr.rel (%p222) target = $region32
        $region31: #{tpu_custom_call.1} parent=11 // pred_region
          _
        $region32: #{tpu_custom_call.1} parent=11 // pred_fallthru
          _
      $region12: #{tpu_custom_call.1} parent=5 // pred_fallthru
        _
      %p225 = scmp.lt.s32.totalorder %s20, 2
      // Predicated region
      $region33: #{tpu_custom_call.1} parent=5 // pred_check
        %p226 = pneg %p225
      $region34: #{tpu_custom_call.1} parent=5 // pred_check_branch
        %228 = sbr.rel (%p226) target = $region36
      $region35: #{tpu_custom_call.1} parent=5 // pred_region
        // Predicated region
        $region37: #{tpu_custom_call.1} parent=35 // pred_check
          %p229 = pneg %p40
        $region38: #{tpu_custom_call.1} parent=35 // pred_check_branch
          %231 = sbr.rel (%p229) target = $region40
        $region39: #{tpu_custom_call.1} parent=35 // pred_region
          #allocation12 [shape = 'u32[6]{0}', space=smem, size = 0x18, scoped, tag = 'DMA stride descriptor']
          %s232 = sand.u32 %s30, 1
          %s233 = scalar_lea.sflag [#allocation4], %s232
          %s234 = sand.u32 %s30, 1
          %s235 = smul.addr %s234, 64
          %s236 = scalar_lea.vmem [#allocation3], %s235
          %s237 = smul.u32 2, %s20
          %239 = vsyncadd %s233, 0
          %s240 = smul.addr %s237, 8
          %s241 = scalar_lea.hbm %s0, %s240
          %s243 = sshll.u32 1, 14
          %s244 = sxor.u32 4294967295, %s243
          %s246 = sld [smem:[#allocation0]]
          %s247 = sadd.s32 2, %s246
          %s249 = sshll.u32 7, 26
          %s250 = sxor.u32 4294967295, %s249
          %s251 = sand.u32 0, %s250
          %s252 = sshll.u32 %s247, 26
          %s253 = sor.u32 %s251, %s252
          %s254 = sshll.u32 %s241, 4
          %s255 = int_to_ptr.hbm [resolvable:$true] %s254
          %s256 = sshll.u32 %s236, 4
          %s257 = int_to_ptr.vmem [resolvable:$true] %s256
          %263 = sst [smem:[#allocation12]] 512
          %s264 = scalar_lea.smem [#allocation12], 1
          %265 = sst [smem:[%s264]] 256
          %s266 = scalar_lea.smem [#allocation12], 2
          %267 = sst [smem:[%s266]] 2
          %s268 = scalar_lea.smem [#allocation12], 3
          %269 = sst [smem:[%s268]] 128
          %s270 = scalar_lea.smem [#allocation12], 4
          %271 = sst [smem:[%s270]] 128
          %s272 = scalar_lea.smem [#allocation12], 5
          %273 = sst [smem:[%s272]] 8
          %275 = dma.general %s255, 1024, %s257, %s233, [#allocation11], [#allocation12], %s253, 0
        $region40: #{tpu_custom_call.1} parent=35 // pred_fallthru
          _
      $region36: #{tpu_custom_call.1} parent=5 // pred_fallthru
        _
      %p276 = scmp.le.s32.totalorder 1, %s20
      %p277 = scmp.lt.s32.totalorder %s20, 3
      %p278 = pnand %p276, %p277
      %p279 = pneg %p278
      // Predicated region
      $region41: #{tpu_custom_call.1} parent=5 // pred_check
        _
      $region42: #{tpu_custom_call.1} parent=5 // pred_check_branch
        %281 = sbr.rel (%p278) target = $region44
      $region43: #{tpu_custom_call.1} parent=5 // pred_region
        %s282 = ssub.s32 %s20, 1
        %s283 = sand.u32 %s33, 1
        %s284 = scalar_lea.sflag [#allocation4], %s283
        %s285 = sand.u32 %s33, 1
        %s286 = smul.addr %s285, 64
        %s287 = scalar_lea.vmem [#allocation3], %s286
        // Predicated region
        $region45: #{tpu_custom_call.1} parent=43 // pred_check
          %p288 = pneg %p46
        $region46: #{tpu_custom_call.1} parent=43 // pred_check_branch
          %290 = sbr.rel (%p288) target = $region48
        $region47: #{tpu_custom_call.1} parent=43 // pred_region
          %292 = dma.done %s284, 1024
        $region48: #{tpu_custom_call.1} parent=43 // pred_fallthru
          _
        // Predicated region
        $region49: #{tpu_custom_call.1} parent=43 // pred_check
          %p293 = pneg %p67
        $region50: #{tpu_custom_call.1} parent=43 // pred_check_branch
          %295 = sbr.rel (%p293) target = $region52
        $region51: #{tpu_custom_call.1} parent=43 // pred_region
          %297 = dma.done [#allocation8], 512
        $region52: #{tpu_custom_call.1} parent=43 // pred_fallthru
          _
        // Predicated region
        $region53: #{tpu_custom_call.1} parent=43 // pred_check
          %p298 = pneg %p109
        $region54: #{tpu_custom_call.1} parent=43 // pred_check_branch
          %300 = sbr.rel (%p298) target = $region56
        $region55: #{tpu_custom_call.1} parent=43 // pred_region
          %302 = dma.done [#allocation6], 32
        $region56: #{tpu_custom_call.1} parent=43 // pred_fallthru
          _
        %303 = sfence
        %s304 = sand.u32 %s33, 1
        %s305 = scalar_lea.sflag [#allocation4], %s304
        %s306 = sand.u32 %s33, 1
        %s307 = smul.addr %s306, 64
        %s308 = scalar_lea.vmem [#allocation3], %s307
        %p309 = pneg %p46
        %p310 = pneg %p43
        %p311 = pneg %p67
        %p312 = pneg %p64
        %p313 = pneg %p88
        %p314 = pneg %p85
        %p315 = pneg %p109
        %p316 = pneg %p106
        %p317 = pneg %p130
        %p318 = pneg %p127
        %p319 = pneg %p151
        %p320 = pneg %p148
        %p321 = pneg %p177
        %p322 = pneg %p174
        %s323 = sand.u32 %s164, 1
        %s324 = scalar_lea.sflag [#allocation5], %s323
        %s325 = sand.u32 %s164, 1
        %s326 = smul.addr %s325, 32
        %s327 = scalar_lea.vmem [#allocation10], %s326
        %s328 = smul.u32 2, %s25
        %s329 = smul.u32 2, %s25
        %v331 = vld [vmem:[%s287] sm:$0xff]
        %v332 = vld [vmem:[%s287 + $0x8] sm:$0xff]
        %v333 = vld [vmem:[%s287 + $0x10] sm:$0xff]
        %v334 = vld [vmem:[%s287 + $0x18] sm:$0xff]
        %v335 = vld [vmem:[%s287 + $0x20] sm:$0xff]
        %v336 = vld [vmem:[%s287 + $0x28] sm:$0xff]
        %v337 = vld [vmem:[%s287 + $0x30] sm:$0xff]
        %v338 = vld [vmem:[%s287 + $0x38] sm:$0xff]
        %v339 = vpack.c.bf16 %v332, %v331
        %v340 = vpack.c.bf16 %v334, %v333
        %v341 = vpack.c.bf16 %v336, %v335
        %v342 = vpack.c.bf16 %v338, %v337
        %v343 = vld [vmem:[#allocation7] sm:$0xf]
        %v344 = vld [vmem:[#allocation7 + $0x4] sm:$0xf]
        %v345 = vld [vmem:[#allocation7 + $0x8] sm:$0xf]
        %v346 = vld [vmem:[#allocation7 + $0xc] sm:$0xf]
        %v347 = vld [vmem:[%s2] sm:$0x1]
        %v349 = vperm.slane %v347, 0
        %v355 = vunpack.c.l.b16 %v343
        %v356 = vunpack.c.l.b16 %v344
        %v357 = vunpack.c.l.b16 %v345
        %v358 = vunpack.c.l.b16 %v346
        %v359 = vpack.c.b16 %v356, %v355
        %v360 = vpack.c.b16 %v358, %v357
        %vm363 = vcmask 261120
        %v365 = vsel %vm363, %v339, 0
        %v368 = vsel %vm363, %v340, 0
        %v371 = vsel %vm363, %v341, 0
        %v374 = vsel %vm363, %v342, 0
        %376 = vmatpush.bf16.msra.mxu0 0
        %377 = vmatpush.bf16.msra.mxu0 0
        %378 = vmatpush.bf16.msra.mxu0 0
        %379 = vmatpush.bf16.msra.mxu0 0
        %380 = vmatpush.bf16.msra.mxu0 0
        %381 = vmatpush.bf16.msra.mxu0 0
        %382 = vmatpush.bf16.msra.mxu0 %v360
        %383 = vmatpush.bf16.msra.mxu0 %v359
        %384 = vmatmul.bf16.gmra.mxu0 %v365
        %v385 = vpop.f32.mrf.mxu0
        %v386 = vadd.f32 %v349, %v385
        %v387 = vpop.f32.mrf.mxu0
        %v388 = vadd.f32 %v349, %v387
        %389 = vmatmul.bf16.gmra.mxu0 %v368
        %v390 = vpop.f32.mrf.mxu0
        %v391 = vadd.f32 %v349, %v390
        %v392 = vpop.f32.mrf.mxu0
        %v393 = vadd.f32 %v349, %v392
        %394 = vmatmul.bf16.gmra.mxu0 %v371
        %v395 = vpop.f32.mrf.mxu0
        %v396 = vadd.f32 %v349, %v395
        %v397 = vpop.f32.mrf.mxu0
        %v398 = vadd.f32 %v349, %v397
        %399 = vmatmul.bf16.gmra.mxu0 %v374
        %v400 = vpop.f32.mrf.mxu0
        %v401 = vadd.f32 %v349, %v400
        %v402 = vpop.f32.mrf.mxu0
        %v403 = vadd.f32 %v349, %v402
        %404 = vdwg.mxu0
        %v405 = vxor.u32 %v386, 2147483648
        %v406 = vxor.u32 %v388, 2147483648
        %v407 = vxor.u32 %v391, 2147483648
        %v408 = vxor.u32 %v393, 2147483648
        %v409 = vxor.u32 %v396, 2147483648
        %v410 = vxor.u32 %v398, 2147483648
        %v411 = vxor.u32 %v401, 2147483648
        %v412 = vxor.u32 %v403, 2147483648
        %v413 = vmul.f32 %v405, 1.442695
        %v414 = vpow.pop %v413
        %v415 = vmul.f32 %v406, 1.442695
        %v416 = vpow.pop %v415
        %v417 = vmul.f32 %v407, 1.442695
        %v418 = vpow.pop %v417
        %v419 = vmul.f32 %v408, 1.442695
        %v420 = vpow.pop %v419
        %v421 = vmul.f32 %v409, 1.442695
        %v422 = vpow.pop %v421
        %v423 = vmul.f32 %v410, 1.442695
        %v424 = vpow.pop %v423
        %v425 = vmul.f32 %v411, 1.442695
        %v426 = vpow.pop %v425
        %v427 = vmul.f32 %v412, 1.442695
        %v428 = vpow.pop %v427
        %v429 = vadd.f32 %v414, 1.0
        %v430 = vadd.f32 %v416, 1.0
        %v431 = vadd.f32 %v418, 1.0
        %v432 = vadd.f32 %v420, 1.0
        %v433 = vadd.f32 %v422, 1.0
        %v434 = vadd.f32 %v424, 1.0
        %v435 = vadd.f32 %v426, 1.0
        %v436 = vadd.f32 %v428, 1.0
        %v437 = vrcp.pop %v429
        %v438 = vmul.f32 %v429, %v437
        %v439 = vsub.f32 1.0, %v438
        %v440 = vmul.f32 %v437, %v439
        %v441 = vadd.f32 %v437, %v440
        %vm442 = vweird.f32 %v429
        %vm443 = vweird.f32 %v437
        %vm444 = vmor %vm442, %vm443
        %v445 = vsel %vm444, %v437, %v441
        %v446 = vand.u32 2147483647, %v429
        %vm447 = vcmp.eq.f32.partialorder %v446, 8.507059e+37
        %v448 = vand.u32 %v429, 2147483648
        %v449 = vor.u32 1.1754944e-38, %v448
        %v450 = vsel %vm447, %v449, %v445
        %v451 = vmul.f32 1.0, %v450
        %v452 = vrcp.pop %v430
        %v453 = vmul.f32 %v430, %v452
        %v454 = vsub.f32 1.0, %v453
        %v455 = vmul.f32 %v452, %v454
        %v456 = vadd.f32 %v452, %v455
        %vm457 = vweird.f32 %v430
        %vm458 = vweird.f32 %v452
        %vm459 = vmor %vm457, %vm458
        %v460 = vsel %vm459, %v452, %v456
        %v461 = vand.u32 2147483647, %v430
        %vm462 = vcmp.eq.f32.partialorder %v461, 8.507059e+37
        %v463 = vand.u32 %v430, 2147483648
        %v464 = vor.u32 1.1754944e-38, %v463
        %v465 = vsel %vm462, %v464, %v460
        %v466 = vmul.f32 1.0, %v465
        %v467 = vrcp.pop %v431
        %v468 = vmul.f32 %v431, %v467
        %v469 = vsub.f32 1.0, %v468
        %v470 = vmul.f32 %v467, %v469
        %v471 = vadd.f32 %v467, %v470
        %vm472 = vweird.f32 %v431
        %vm473 = vweird.f32 %v467
        %vm474 = vmor %vm472, %vm473
        %v475 = vsel %vm474, %v467, %v471
        %v476 = vand.u32 2147483647, %v431
        %vm477 = vcmp.eq.f32.partialorder %v476, 8.507059e+37
        %v478 = vand.u32 %v431, 2147483648
        %v479 = vor.u32 1.1754944e-38, %v478
        %v480 = vsel %vm477, %v479, %v475
        %v481 = vmul.f32 1.0, %v480
        %v482 = vrcp.pop %v432
        %v483 = vmul.f32 %v432, %v482
        %v484 = vsub.f32 1.0, %v483
        %v485 = vmul.f32 %v482, %v484
        %v486 = vadd.f32 %v482, %v485
        %vm487 = vweird.f32 %v432
        %vm488 = vweird.f32 %v482
        %vm489 = vmor %vm487, %vm488
        %v490 = vsel %vm489, %v482, %v486
        %v491 = vand.u32 2147483647, %v432
        %vm492 = vcmp.eq.f32.partialorder %v491, 8.507059e+37
        %v493 = vand.u32 %v432, 2147483648
        %v494 = vor.u32 1.1754944e-38, %v493
        %v495 = vsel %vm492, %v494, %v490
        %v496 = vmul.f32 1.0, %v495
        %v497 = vrcp.pop %v433
        %v498 = vmul.f32 %v433, %v497
        %v499 = vsub.f32 1.0, %v498
        %v500 = vmul.f32 %v497, %v499
        %v501 = vadd.f32 %v497, %v500
        %vm502 = vweird.f32 %v433
        %vm503 = vweird.f32 %v497
        %vm504 = vmor %vm502, %vm503
        %v505 = vsel %vm504, %v497, %v501
        %v506 = vand.u32 2147483647, %v433
        %vm507 = vcmp.eq.f32.partialorder %v506, 8.507059e+37
        %v508 = vand.u32 %v433, 2147483648
        %v509 = vor.u32 1.1754944e-38, %v508
        %v510 = vsel %vm507, %v509, %v505
        %v511 = vmul.f32 1.0, %v510
        %v512 = vrcp.pop %v434
        %v513 = vmul.f32 %v434, %v512
        %v514 = vsub.f32 1.0, %v513
        %v515 = vmul.f32 %v512, %v514
        %v516 = vadd.f32 %v512, %v515
        %vm517 = vweird.f32 %v434
        %vm518 = vweird.f32 %v512
        %vm519 = vmor %vm517, %vm518
        %v520 = vsel %vm519, %v512, %v516
        %v521 = vand.u32 2147483647, %v434
        %vm522 = vcmp.eq.f32.partialorder %v521, 8.507059e+37
        %v523 = vand.u32 %v434, 2147483648
        %v524 = vor.u32 1.1754944e-38, %v523
        %v525 = vsel %vm522, %v524, %v520
        %v526 = vmul.f32 1.0, %v525
        %v527 = vrcp.pop %v435
        %v528 = vmul.f32 %v435, %v527
        %v529 = vsub.f32 1.0, %v528
        %v530 = vmul.f32 %v527, %v529
        %v531 = vadd.f32 %v527, %v530
        %vm532 = vweird.f32 %v435
        %vm533 = vweird.f32 %v527
        %vm534 = vmor %vm532, %vm533
        %v535 = vsel %vm534, %v527, %v531
        %v536 = vand.u32 2147483647, %v435
        %vm537 = vcmp.eq.f32.partialorder %v536, 8.507059e+37
        %v538 = vand.u32 %v435, 2147483648
        %v539 = vor.u32 1.1754944e-38, %v538
        %v540 = vsel %vm537, %v539, %v535
        %v541 = vmul.f32 1.0, %v540
        %v542 = vrcp.pop %v436
        %v543 = vmul.f32 %v436, %v542
        %v544 = vsub.f32 1.0, %v543
        %v545 = vmul.f32 %v542, %v544
        %v546 = vadd.f32 %v542, %v545
        %vm547 = vweird.f32 %v436
        %vm548 = vweird.f32 %v542
        %vm549 = vmor %vm547, %vm548
        %v550 = vsel %vm549, %v542, %v546
        %v551 = vand.u32 2147483647, %v436
        %vm552 = vcmp.eq.f32.partialorder %v551, 8.507059e+37
        %v553 = vand.u32 %v436, 2147483648
        %v554 = vor.u32 1.1754944e-38, %v553
        %v555 = vsel %vm552, %v554, %v550
        %v556 = vmul.f32 1.0, %v555
        %v557 = vmul.f32 %v386, %v451
        %v558 = vmul.f32 %v388, %v466
        %v559 = vmul.f32 %v391, %v481
        %v560 = vmul.f32 %v393, %v496
        %v561 = vmul.f32 %v396, %v511
        %v562 = vmul.f32 %v398, %v526
        %v563 = vmul.f32 %v401, %v541
        %v564 = vmul.f32 %v403, %v556
        %v565 = vadd.f32 %v331, %v557
        %v566 = vadd.f32 %v332, %v558
        %v567 = vadd.f32 %v333, %v559
        %v568 = vadd.f32 %v334, %v560
        %v569 = vadd.f32 %v335, %v561
        %v570 = vadd.f32 %v336, %v562
        %v571 = vadd.f32 %v337, %v563
        %v572 = vadd.f32 %v338, %v564
        %v573 = vpack.c.bf16 %v566, %v565
        %v574 = vpack.c.bf16 %v568, %v567
        %v575 = vpack.c.bf16 %v570, %v569
        %v576 = vpack.c.bf16 %v572, %v571
        %s577 = scalar_lea.vmem [#allocation7], 16
        %v578 = vld [vmem:[%s577] sm:$0xf]
        %v579 = vld [vmem:[%s577 + $0x4] sm:$0xf]
        %v580 = vld [vmem:[%s577 + $0x8] sm:$0xf]
        %v581 = vld [vmem:[%s577 + $0xc] sm:$0xf]
        %s582 = scalar_lea.vmem %s2, 1
        %v583 = vld [vmem:[%s582] sm:$0x1]
        %v585 = vperm.slane %v583, 0
        %v591 = vunpack.c.l.b16 %v578
        %v592 = vunpack.c.l.b16 %v579
        %v593 = vunpack.c.l.b16 %v580
        %v594 = vunpack.c.l.b16 %v581
        %v595 = vpack.c.b16 %v592, %v591
        %v596 = vpack.c.b16 %v594, %v593
        %v600 = vsel %vm363, %v573, 0
        %v603 = vsel %vm363, %v574, 0
        %v606 = vsel %vm363, %v575, 0
        %v609 = vsel %vm363, %v576, 0
        %611 = vmatpush.bf16.msra.mxu0 0
        %612 = vmatpush.bf16.msra.mxu0 0
        %613 = vmatpush.bf16.msra.mxu0 0
        %614 = vmatpush.bf16.msra.mxu0 0
        %615 = vmatpush.bf16.msra.mxu0 0
        %616 = vmatpush.bf16.msra.mxu0 0
        %617 = vmatpush.bf16.msra.mxu0 %v596
        %618 = vmatpush.bf16.msra.mxu0 %v595
        %619 = vmatmul.bf16.gmra.mxu0 %v600
        %v620 = vpop.f32.mrf.mxu0
        %v621 = vadd.f32 %v585, %v620
        %v622 = vpop.f32.mrf.mxu0
        %v623 = vadd.f32 %v585, %v622
        %624 = vmatmul.bf16.gmra.mxu0 %v603
        %v625 = vpop.f32.mrf.mxu0
        %v626 = vadd.f32 %v585, %v625
        %v627 = vpop.f32.mrf.mxu0
        %v628 = vadd.f32 %v585, %v627
        %629 = vmatmul.bf16.gmra.mxu0 %v606
        %v630 = vpop.f32.mrf.mxu0
        %v631 = vadd.f32 %v585, %v630
        %v632 = vpop.f32.mrf.mxu0
        %v633 = vadd.f32 %v585, %v632
        %634 = vmatmul.bf16.gmra.mxu0 %v609
        %v635 = vpop.f32.mrf.mxu0
        %v636 = vadd.f32 %v585, %v635
        %v637 = vpop.f32.mrf.mxu0
        %v638 = vadd.f32 %v585, %v637
        %639 = vdwg.mxu0
        %v640 = vxor.u32 %v621, 2147483648
        %v641 = vxor.u32 %v623, 2147483648
        %v642 = vxor.u32 %v626, 2147483648
        %v643 = vxor.u32 %v628, 2147483648
        %v644 = vxor.u32 %v631, 2147483648
        %v645 = vxor.u32 %v633, 2147483648
        %v646 = vxor.u32 %v636, 2147483648
        %v647 = vxor.u32 %v638, 2147483648
        %v648 = vmul.f32 %v640, 1.442695
        %v649 = vpow.pop %v648
        %v650 = vmul.f32 %v641, 1.442695
        %v651 = vpow.pop %v650
        %v652 = vmul.f32 %v642, 1.442695
        %v653 = vpow.pop %v652
        %v654 = vmul.f32 %v643, 1.442695
        %v655 = vpow.pop %v654
        %v656 = vmul.f32 %v644, 1.442695
        %v657 = vpow.pop %v656
        %v658 = vmul.f32 %v645, 1.442695
        %v659 = vpow.pop %v658
        %v660 = vmul.f32 %v646, 1.442695
        %v661 = vpow.pop %v660
        %v662 = vmul.f32 %v647, 1.442695
        %v663 = vpow.pop %v662
        %v664 = vadd.f32 %v649, 1.0
        %v665 = vadd.f32 %v651, 1.0
        %v666 = vadd.f32 %v653, 1.0
        %v667 = vadd.f32 %v655, 1.0
        %v668 = vadd.f32 %v657, 1.0
        %v669 = vadd.f32 %v659, 1.0
        %v670 = vadd.f32 %v661, 1.0
        %v671 = vadd.f32 %v663, 1.0
        %v672 = vrcp.pop %v664
        %v673 = vmul.f32 %v664, %v672
        %v674 = vsub.f32 1.0, %v673
        %v675 = vmul.f32 %v672, %v674
        %v676 = vadd.f32 %v672, %v675
        %vm677 = vweird.f32 %v664
        %vm678 = vweird.f32 %v672
        %vm679 = vmor %vm677, %vm678
        %v680 = vsel %vm679, %v672, %v676
        %v681 = vand.u32 2147483647, %v664
        %vm682 = vcmp.eq.f32.partialorder %v681, 8.507059e+37
        %v683 = vand.u32 %v664, 2147483648
        %v684 = vor.u32 1.1754944e-38, %v683
        %v685 = vsel %vm682, %v684, %v680
        %v686 = vmul.f32 1.0, %v685
        %v687 = vrcp.pop %v665
        %v688 = vmul.f32 %v665, %v687
        %v689 = vsub.f32 1.0, %v688
        %v690 = vmul.f32 %v687, %v689
        %v691 = vadd.f32 %v687, %v690
        %vm692 = vweird.f32 %v665
        %vm693 = vweird.f32 %v687
        %vm694 = vmor %vm692, %vm693
        %v695 = vsel %vm694, %v687, %v691
        %v696 = vand.u32 2147483647, %v665
        %vm697 = vcmp.eq.f32.partialorder %v696, 8.507059e+37
        %v698 = vand.u32 %v665, 2147483648
        %v699 = vor.u32 1.1754944e-38, %v698
        %v700 = vsel %vm697, %v699, %v695
        %v701 = vmul.f32 1.0, %v700
        %v702 = vrcp.pop %v666
        %v703 = vmul.f32 %v666, %v702
        %v704 = vsub.f32 1.0, %v703
        %v705 = vmul.f32 %v702, %v704
        %v706 = vadd.f32 %v702, %v705
        %vm707 = vweird.f32 %v666
        %vm708 = vweird.f32 %v702
        %vm709 = vmor %vm707, %vm708
        %v710 = vsel %vm709, %v702, %v706
        %v711 = vand.u32 2147483647, %v666
        %vm712 = vcmp.eq.f32.partialorder %v711, 8.507059e+37
        %v713 = vand.u32 %v666, 2147483648
        %v714 = vor.u32 1.1754944e-38, %v713
        %v715 = vsel %vm712, %v714, %v710
        %v716 = vmul.f32 1.0, %v715
        %v717 = vrcp.pop %v667
        %v718 = vmul.f32 %v667, %v717
        %v719 = vsub.f32 1.0, %v718
        %v720 = vmul.f32 %v717, %v719
        %v721 = vadd.f32 %v717, %v720
        %vm722 = vweird.f32 %v667
        %vm723 = vweird.f32 %v717
        %vm724 = vmor %vm722, %vm723
        %v725 = vsel %vm724, %v717, %v721
        %v726 = vand.u32 2147483647, %v667
        %vm727 = vcmp.eq.f32.partialorder %v726, 8.507059e+37
        %v728 = vand.u32 %v667, 2147483648
        %v729 = vor.u32 1.1754944e-38, %v728
        %v730 = vsel %vm727, %v729, %v725
        %v731 = vmul.f32 1.0, %v730
        %v732 = vrcp.pop %v668
        %v733 = vmul.f32 %v668, %v732
        %v734 = vsub.f32 1.0, %v733
        %v735 = vmul.f32 %v732, %v734
        %v736 = vadd.f32 %v732, %v735
        %vm737 = vweird.f32 %v668
        %vm738 = vweird.f32 %v732
        %vm739 = vmor %vm737, %vm738
        %v740 = vsel %vm739, %v732, %v736
        %v741 = vand.u32 2147483647, %v668
        %vm742 = vcmp.eq.f32.partialorder %v741, 8.507059e+37
        %v743 = vand.u32 %v668, 2147483648
        %v744 = vor.u32 1.1754944e-38, %v743
        %v745 = vsel %vm742, %v744, %v740
        %v746 = vmul.f32 1.0, %v745
        %v747 = vrcp.pop %v669
        %v748 = vmul.f32 %v669, %v747
        %v749 = vsub.f32 1.0, %v748
        %v750 = vmul.f32 %v747, %v749
        %v751 = vadd.f32 %v747, %v750
        %vm752 = vweird.f32 %v669
        %vm753 = vweird.f32 %v747
        %vm754 = vmor %vm752, %vm753
        %v755 = vsel %vm754, %v747, %v751
        %v756 = vand.u32 2147483647, %v669
        %vm757 = vcmp.eq.f32.partialorder %v756, 8.507059e+37
        %v758 = vand.u32 %v669, 2147483648
        %v759 = vor.u32 1.1754944e-38, %v758
        %v760 = vsel %vm757, %v759, %v755
        %v761 = vmul.f32 1.0, %v760
        %v762 = vrcp.pop %v670
        %v763 = vmul.f32 %v670, %v762
        %v764 = vsub.f32 1.0, %v763
        %v765 = vmul.f32 %v762, %v764
        %v766 = vadd.f32 %v762, %v765
        %vm767 = vweird.f32 %v670
        %vm768 = vweird.f32 %v762
        %vm769 = vmor %vm767, %vm768
        %v770 = vsel %vm769, %v762, %v766
        %v771 = vand.u32 2147483647, %v670
        %vm772 = vcmp.eq.f32.partialorder %v771, 8.507059e+37
        %v773 = vand.u32 %v670, 2147483648
        %v774 = vor.u32 1.1754944e-38, %v773
        %v775 = vsel %vm772, %v774, %v770
        %v776 = vmul.f32 1.0, %v775
        %v777 = vrcp.pop %v671
        %v778 = vmul.f32 %v671, %v777
        %v779 = vsub.f32 1.0, %v778
        %v780 = vmul.f32 %v777, %v779
        %v781 = vadd.f32 %v777, %v780
        %vm782 = vweird.f32 %v671
        %vm783 = vweird.f32 %v777
        %vm784 = vmor %vm782, %vm783
        %v785 = vsel %vm784, %v777, %v781
        %v786 = vand.u32 2147483647, %v671
        %vm787 = vcmp.eq.f32.partialorder %v786, 8.507059e+37
        %v788 = vand.u32 %v671, 2147483648
        %v789 = vor.u32 1.1754944e-38, %v788
        %v790 = vsel %vm787, %v789, %v785
        %v791 = vmul.f32 1.0, %v790
        %v792 = vmul.f32 %v621, %v686
        %v793 = vmul.f32 %v623, %v701
        %v794 = vmul.f32 %v626, %v716
        %v795 = vmul.f32 %v628, %v731
        %v796 = vmul.f32 %v631, %v746
        %v797 = vmul.f32 %v633, %v761
        %v798 = vmul.f32 %v636, %v776
        %v799 = vmul.f32 %v638, %v791
        %v800 = vadd.f32 %v565, %v792
        %v801 = vadd.f32 %v566, %v793
        %v802 = vadd.f32 %v567, %v794
        %v803 = vadd.f32 %v568, %v795
        %v804 = vadd.f32 %v569, %v796
        %v805 = vadd.f32 %v570, %v797
        %v806 = vadd.f32 %v571, %v798
        %v807 = vadd.f32 %v572, %v799
        %s808 = sld [smem:[#allocation9]]
        %v809 = vstv %s808
        %v810 = vmul.f32 %v809, %v800
        %v811 = vmul.f32 %v809, %v801
        %s812 = sld [smem:[#allocation9 + $0x1]]
        %v813 = vstv %s812
        %v814 = vmul.f32 %v813, %v802
        %v815 = vmul.f32 %v813, %v803
        %v816 = vadd.f32 %v810, %v814
        %v817 = vadd.f32 %v811, %v815
        %s818 = sld [smem:[#allocation9 + $0x2]]
        %v819 = vstv %s818
        %v820 = vmul.f32 %v819, %v804
        %v821 = vmul.f32 %v819, %v805
        %v822 = vadd.f32 %v816, %v820
        %v823 = vadd.f32 %v817, %v821
        %s824 = sld [smem:[#allocation9 + $0x3]]
        %v825 = vstv %s824
        %v826 = vmul.f32 %v825, %v806
        %v827 = vmul.f32 %v825, %v807
        %v828 = vadd.f32 %v822, %v826
        %v829 = vadd.f32 %v823, %v827
        %830 = vst.msk [vmem:[#allocation2] sm:$0xff] %vm363, %v828
        %831 = vst.msk [vmem:[#allocation2 + $0x8] sm:$0xff] %vm363, %v829
        %s832 = sld [smem:[#allocation9 + $0x80]]
        %v833 = vstv %s832
        %v834 = vmul.f32 %v833, %v800
        %v835 = vmul.f32 %v833, %v801
        %s836 = sld [smem:[#allocation9 + $0x81]]
        %v837 = vstv %s836
        %v838 = vmul.f32 %v837, %v802
        %v839 = vmul.f32 %v837, %v803
        %v840 = vadd.f32 %v834, %v838
        %v841 = vadd.f32 %v835, %v839
        %s842 = sld [smem:[#allocation9 + $0x82]]
        %v843 = vstv %s842
        %v844 = vmul.f32 %v843, %v804
        %v845 = vmul.f32 %v843, %v805
        %v846 = vadd.f32 %v840, %v844
        %v847 = vadd.f32 %v841, %v845
        %s848 = sld [smem:[#allocation9 + $0x83]]
        %v849 = vstv %s848
        %v850 = vmul.f32 %v849, %v806
        %v851 = vmul.f32 %v849, %v807
        %v852 = vadd.f32 %v846, %v850
        %v853 = vadd.f32 %v847, %v851
        %854 = vst.msk [vmem:[#allocation2 + $0x10] sm:$0xff] %vm363, %v852
        %855 = vst.msk [vmem:[#allocation2 + $0x18] sm:$0xff] %vm363, %v853
        %v856 = vld [vmem:[#allocation2] sm:$0xff]
        %v857 = vld [vmem:[#allocation2 + $0x8] sm:$0xff]
        %v858 = vld [vmem:[#allocation2 + $0x10] sm:$0xff]
        %v859 = vld [vmem:[#allocation2 + $0x18] sm:$0xff]
        %v860 = vpack.c.bf16 %v857, %v856
        %v861 = vpack.c.bf16 %v859, %v858
        %v862 = vld [vmem:[%s4] sm:$0xf]
        %v863 = vld [vmem:[%s4 + $0x4] sm:$0xf]
        %v864 = vld [vmem:[%s4 + $0x8] sm:$0xf]
        %v865 = vld [vmem:[%s4 + $0xc] sm:$0xf]
        %v870 = vunpack.c.l.b16 %v862
        %v871 = vunpack.c.l.b16 %v863
        %v872 = vunpack.c.l.b16 %v864
        %v873 = vunpack.c.l.b16 %v865
        %v874 = vpack.c.b16 %v871, %v870
        %v875 = vpack.c.b16 %v873, %v872
        %v879 = vsel %vm363, %v860, 0
        %v882 = vsel %vm363, %v861, 0
        %884 = vmatpush.bf16.msra.mxu0 0
        %885 = vmatpush.bf16.msra.mxu0 0
        %886 = vmatpush.bf16.msra.mxu0 0
        %887 = vmatpush.bf16.msra.mxu0 0
        %888 = vmatpush.bf16.msra.mxu0 0
        %889 = vmatpush.bf16.msra.mxu0 0
        %890 = vmatpush.bf16.msra.mxu0 %v875
        %891 = vmatpush.bf16.msra.mxu0 %v874
        %892 = vmatmul.bf16.gmra.mxu0 %v879
        %v893 = vpop.f32.mrf.mxu0
        %v894 = vadd.f32 0.0, %v893
        %v895 = vpop.f32.mrf.mxu0
        %v896 = vadd.f32 0.0, %v895
        %897 = vmatmul.bf16.gmra.mxu0 %v882
        %v898 = vpop.f32.mrf.mxu0
        %v899 = vadd.f32 0.0, %v898
        %v900 = vpop.f32.mrf.mxu0
        %v901 = vadd.f32 0.0, %v900
        %902 = vdwg.mxu0
        %v903 = vpack.c.bf16 %v896, %v894
        %v904 = vpack.c.bf16 %v901, %v899
        %v905 = vld [vmem:[%s5] sm:$0xf]
        %v906 = vld [vmem:[%s5 + $0x4] sm:$0xf]
        %v909 = vunpack.c.l.b16 %v905
        %v910 = vunpack.c.l.b16 %v906
        %v911 = vpack.c.b16 %v910, %v909
        %vm913 = vcmask 130048
        %v915 = vsel %vm913, %v903, 0
        %v918 = vsel %vm913, %v904, 0
        %920 = vmatpush.bf16.msra.mxu0 0
        %921 = vmatpush.bf16.msra.mxu0 0
        %922 = vmatpush.bf16.msra.mxu0 0
        %923 = vmatpush.bf16.msra.mxu0 0
        %924 = vmatpush.bf16.msra.mxu0 0
        %925 = vmatpush.bf16.msra.mxu0 0
        %926 = vmatpush.bf16.msra.mxu0 0
        %927 = vmatpush.bf16.msra.mxu0 %v911
        %928 = vmatmul.bf16.gmra.mxu0 %v915
        %v929 = vpop.f32.mrf.mxu0
        %v930 = vadd.f32 0.0, %v929
        %v931 = vpop.f32.mrf.mxu0
        %v932 = vadd.f32 0.0, %v931
        %933 = vmatmul.bf16.gmra.mxu0 %v918
        %v934 = vpop.f32.mrf.mxu0
        %v935 = vadd.f32 0.0, %v934
        %v936 = vpop.f32.mrf.mxu0
        %v937 = vadd.f32 0.0, %v936
        %938 = vdwg.mxu0
        %939 = vst.msk [vmem:[%s327] sm:$0xff] %vm363, %v930
        %940 = vst.msk [vmem:[%s327 + $0x8] sm:$0xff] %vm363, %v932
        %941 = vst.msk [vmem:[%s327 + $0x10] sm:$0xff] %vm363, %v935
        %942 = vst.msk [vmem:[%s327 + $0x18] sm:$0xff] %vm363, %v937
        %s943 = sand.u32 %s164, 1
        %s944 = scalar_lea.sflag [#allocation5], %s943
        %s945 = sand.u32 %s164, 1
        %s946 = smul.addr %s945, 32
        %s947 = scalar_lea.vmem [#allocation10], %s946
        // Predicated region
        $region57: #{tpu_custom_call.1} parent=43 // pred_check
          %p948 = pneg %p174
        $region58: #{tpu_custom_call.1} parent=43 // pred_check_branch
          %950 = sbr.rel (%p948) target = $region60
        $region59: #{tpu_custom_call.1} parent=43 // pred_region
          #allocation14 [shape = 'u32[6]{0}', space=smem, size = 0x18, scoped, tag = 'DMA stride descriptor']
          %s951 = smul.u32 2, %s25
          %953 = vsyncadd %s944, 0
          %s954 = smul.addr %s951, 8
          %s955 = scalar_lea.hbm %s6, %s954
          %s957 = sshll.u32 1, 14
          %s958 = sxor.u32 4294967295, %s957
          %s961 = sshll.u32 7, 18
          %s962 = sxor.u32 4294967295, %s961
          %s963 = sand.u32 0, %s962
          %s965 = sor.u32 %s963, 0
          %s966 = sshll.u32 %s947, 4
          %s967 = int_to_ptr.vmem [resolvable:$true] %s966
          %s968 = sshll.u32 %s955, 4
          %s969 = int_to_ptr.hbm [resolvable:$true] %s968
          %975 = sst [smem:[#allocation14]] 256
          %s976 = scalar_lea.smem [#allocation14], 1
          %977 = sst [smem:[%s976]] 512
          %s978 = scalar_lea.smem [#allocation14], 2
          %979 = sst [smem:[%s978]] 2
          %s980 = scalar_lea.smem [#allocation14], 3
          %981 = sst [smem:[%s980]] 128
          %s982 = scalar_lea.smem [#allocation14], 4
          %983 = sst [smem:[%s982]] 128
          %s984 = scalar_lea.smem [#allocation14], 5
          %985 = sst [smem:[%s984]] 8
          %987 = dma.general %s967, 512, %s969, %s944, [#allocation13], [#allocation14], %s965, 0
        $region60: #{tpu_custom_call.1} parent=43 // pred_fallthru
          _
      $region44: #{tpu_custom_call.1} parent=5 // pred_fallthru
        _
      %p988 = scmp.le.s32.totalorder 2, %s20
      // Predicated region
      $region61: #{tpu_custom_call.1} parent=5 // pred_check
        %p989 = pneg %p988
      $region62: #{tpu_custom_call.1} parent=5 // pred_check_branch
        %991 = sbr.rel (%p989) target = $region64
      $region63: #{tpu_custom_call.1} parent=5 // pred_region
        %s992 = ssub.s32 %s20, 2
        // Predicated region
        $region65: #{tpu_custom_call.1} parent=63 // pred_check
          %p993 = pneg %p180
        $region66: #{tpu_custom_call.1} parent=63 // pred_check_branch
          %995 = sbr.rel (%p993) target = $region68
        $region67: #{tpu_custom_call.1} parent=63 // pred_region
          %s996 = sand.u32 %s165, 1
          %s997 = scalar_lea.sflag [#allocation5], %s996
          %s998 = sand.u32 %s165, 1
          %s999 = smul.addr %s998, 32
          %s1000 = scalar_lea.vmem [#allocation10], %s999
          %1002 = dma.done %s997, 512
        $region68: #{tpu_custom_call.1} parent=63 // pred_fallthru
          _
      $region64: #{tpu_custom_call.1} parent=5 // pred_fallthru
        _
    $region6: #{tpu_custom_call.1} parent=1 // loop_footer
      %s24 = sadd.s32 1, %s20
    $region7: #{tpu_custom_call.1} parent=1 // loop_footer_branch
      %19 = sbr.rel target = $region3
    $region8: #{tpu_custom_call.1} parent=1 // loop_exit
      _
    %1003 = vsyncpa [#allocation4], 1
    %s1004 = scalar_lea.sflag [#allocation4], 1
    %1005 = vsyncpa %s1004, 1
    %1006 = vsyncpa [#allocation8], 1
    %1007 = vsyncpa [#allocation5], 1
    %s1008 = scalar_lea.sflag [#allocation5], 1
    %1009 = vsyncpa %s1008, 1
    %1010 = vsyncpa [#allocation6], 1
    %s1011 = scalar_lea.sflag [#allocation6], 1
    %1012 = vsyncpa %s1011, 1

// kernel: tpu_custom_call.1
$region0: #{tpu_custom_call.1}
  #allocation0 [shape = 'u32[]', space=smem, size = 0x4, offset = 0x4, fixed_abs, tag = 'smem constant byte address 0x4 - core index']
  #allocation1 [shape = 'u32[72,128]{1,0:T(1,128)}', space=vmem, size = 0x9000, scoped, tag = 'internal scratch']
  #allocation2 [shape = 'f32[32,32]{1,0:T(8,128)}', space=vmem, size = 0x4000, scoped, tag = 'scratch operand']
  #allocation11 [shape = 's32[]', space=sflag, size = 0x4, offset = 0, fixed_abs, tag = 'sflag constant byte address 0x0 - dummy sync flag']
  #allocation13 [shape = 's32[]', space=sflag, size = 0x4, offset = 0, fixed_abs, tag = 'sflag constant byte address 0x0 - dummy sync flag']
  %s0 = inlined_call_operand.hbm [shape: f32[4,32,32], index: 0, kind: input, shape index: {}]
  %s1 = inlined_call_operand.hbm [shape: bf16[2,32,32], index: 1, kind: input, shape index: {}]
  %s2 = inlined_call_operand.vmem [shape: f32[2,1,32], index: 2, kind: input, shape index: {}]
  %s3 = inlined_call_operand.vmem [shape: f32[2,4], index: 3, kind: input, shape index: {}]
  %s4 = inlined_call_operand.vmem [shape: bf16[32,16], index: 4, kind: input, shape index: {}]
  %s5 = inlined_call_operand.vmem [shape: bf16[16,32], index: 5, kind: input, shape index: {}]
  %s6 = inlined_call_operand.hbm [shape: f32[2,32,32], index: 6, kind: output, shape index: {}]
  %s7 = sld [smem:[#allocation0]]
  $region69: #{tpu_custom_call.1} parent=0
    _
  %s9 = ssub.s32 1, %s7
  %s10 = scalar_select 0, %s9, %s7
  $region1: #{tpu_custom_call.1} parent=0
    #allocation3 [shape = 'u8[65536]{0}', space=vmem, size = 0x10000, scoped, tag = 'input window, operand 0']
    #allocation4 [shape = 's32[2]{0}', space=sflag, size = 0x8, scoped, tag = 'scoped memory for tpu_custom_call.1']
    #allocation5 [shape = 's32[2]{0}', space=sflag, size = 0x8, scoped, tag = 'scoped memory for tpu_custom_call.1']
    #allocation6 [shape = 's32[2]{0}', space=sflag, size = 0x8, scoped, tag = 'scoped memory for tpu_custom_call.1']
    #allocation7 [shape = 'u8[16384]{0}', space=vmem, size = 0x4000, scoped, tag = 'input window, operand 1, single buffered']
    #allocation8 [shape = 's32[1]{0}', space=sflag, size = 0x4, scoped, tag = 'scoped memory for tpu_custom_call.1']
    #allocation9 [shape = 'u8[1024]{0}', space=smem, size = 0x400, scoped, tag = 'input window, operand 3, single buffered']
    #allocation10 [shape = 'u8[32768]{0}', space=vmem, size = 0x8000, scoped, tag = 'output window, operand 0']
    %11 = vsyncpa [#allocation4], 0
    %s12 = scalar_lea.sflag [#allocation4], 1
    %13 = vsyncpa %s12, 0
    %14 = vsyncpa [#allocation8], 0
    %15 = vsyncpa [#allocation6], 0
    %16 = vsyncpa [#allocation5], 0
    %s17 = scalar_lea.sflag [#allocation5], 1
    %18 = vsyncpa %s17, 0
    loop: start=0, step=1, limit=4
    $region2: #{tpu_custom_call.1} parent=1 // loop_pre_header
      _
    $region3: #{tpu_custom_call.1} parent=1 // loop_header
      %s20 = sphi 0, %s24
      %p21 = scmp.ge.s32.totalorder %s20, 4
      %s30 = sphi 0, %s32
      %s33 = sphi 0, %s30
      %s34 = sphi 0, %s33
      %s50 = sphi 0, %s34
      %s54 = sphi 0, %s54
      %s56 = sphi 0, %s54
      %s57 = sphi 0, %s56
      %s71 = sphi 0, %s57
      %s75 = sphi 0, %s75
      %s77 = sphi 0, %s75
      %s78 = sphi 0, %s77
      %s92 = sphi 0, %s78
      %s96 = sphi 0, %s96
      %s98 = sphi 0, %s96
      %s99 = sphi 0, %s98
      %s113 = sphi 0, %s99
      %s117 = sphi 0, %s117
      %s119 = sphi 0, %s117
      %s120 = sphi 0, %s119
      %s134 = sphi 0, %s120
      %s138 = sphi 0, %s138
      %s140 = sphi 0, %s138
      %s141 = sphi 0, %s140
      %s155 = sphi 0, %s141
      %s161 = sphi 0, %s163
      %s164 = sphi 0, %s161
      %s165 = sphi 0, %s164
      %s181 = sphi 0, %s165
    $region4: #{tpu_custom_call.1} parent=1 // loop_header_branch
      %23 = sbr.rel (%p21) target = $region8
    $region5: #{tpu_custom_call.1} parent=1 // loop_body
      %s25 = ssub.s32 %s20, 1
      %s26 = ssub.s32 %s20, 2
      %s27 = sadd.s32 %s20, 1
      %s28 = ssub.s32 %s20, %s27
      %p29 = scmp.eq.s32.totalorder %s28, 0
      %s31 = sadd.s32 %s30, 1
      %s32 = scalar_select %p29, %s30, %s31
      %p35 = pneg %p29
      %p36 = scmp.eq.s32.totalorder %s20, 1
      %p37 = por %p35, %p36
      %p38 = scmp.ne.s32.totalorder %s30, %s33
      %p39 = scmp.eq.s32.totalorder %s20, 0
      %p40 = por %p38, %p39
      %p41 = scmp.ne.s32.totalorder %s30, %s33
      %p42 = scmp.eq.s32.totalorder %s25, 1
      %p43 = por %p41, %p42
      %p44 = scmp.ne.s32.totalorder %s33, %s34
      %p45 = scmp.eq.s32.totalorder %s25, 0
      %p46 = por %p44, %p45
      %p47 = scmp.ne.s32.totalorder %s33, %s34
      %p48 = scmp.eq.s32.totalorder %s26, 1
      %p49 = por %p47, %p48
      %p51 = scmp.ne.s32.totalorder %s34, %s50
      %p52 = scmp.eq.s32.totalorder %s26, 0
      %p53 = por %p51, %p52
      %s55 = sadd.s32 %s54, 1
      %p58 = scmp.eq.s32.totalorder %s20, 1
      %p59 = scmp.ne.s32.totalorder %s54, %s56
      %p60 = scmp.eq.s32.totalorder %s20, 0
      %p61 = por %p59, %p60
      %p62 = scmp.ne.s32.totalorder %s54, %s56
      %p63 = scmp.eq.s32.totalorder %s25, 1
      %p64 = por %p62, %p63
      %p65 = scmp.ne.s32.totalorder %s56, %s57
      %p66 = scmp.eq.s32.totalorder %s25, 0
      %p67 = por %p65, %p66
      %p68 = scmp.ne.s32.totalorder %s56, %s57
      %p69 = scmp.eq.s32.totalorder %s26, 1
      %p70 = por %p68, %p69
      %p72 = scmp.ne.s32.totalorder %s57, %s71
      %p73 = scmp.eq.s32.totalorder %s26, 0
      %p74 = por %p72, %p73
      %s76 = sadd.s32 %s75, 1
      %p79 = scmp.eq.s32.totalorder %s20, 1
      %p80 = scmp.ne.s32.totalorder %s75, %s77
      %p81 = scmp.eq.s32.totalorder %s20, 0
      %p82 = por %p80, %p81
      %p83 = scmp.ne.s32.totalorder %s75, %s77
      %p84 = scmp.eq.s32.totalorder %s25, 1
      %p85 = por %p83, %p84
      %p86 = scmp.ne.s32.totalorder %s77, %s78
      %p87 = scmp.eq.s32.totalorder %s25, 0
      %p88 = por %p86, %p87
      %p89 = scmp.ne.s32.totalorder %s77, %s78
      %p90 = scmp.eq.s32.totalorder %s26, 1
      %p91 = por %p89, %p90
      %p93 = scmp.ne.s32.totalorder %s78, %s92
      %p94 = scmp.eq.s32.totalorder %s26, 0
      %p95 = por %p93, %p94
      %s97 = sadd.s32 %s96, 1
      %p100 = scmp.eq.s32.totalorder %s20, 1
      %p101 = scmp.ne.s32.totalorder %s96, %s98
      %p102 = scmp.eq.s32.totalorder %s20, 0
      %p103 = por %p101, %p102
      %p104 = scmp.ne.s32.totalorder %s96, %s98
      %p105 = scmp.eq.s32.totalorder %s25, 1
      %p106 = por %p104, %p105
      %p107 = scmp.ne.s32.totalorder %s98, %s99
      %p108 = scmp.eq.s32.totalorder %s25, 0
      %p109 = por %p107, %p108
      %p110 = scmp.ne.s32.totalorder %s98, %s99
      %p111 = scmp.eq.s32.totalorder %s26, 1
      %p112 = por %p110, %p111
      %p114 = scmp.ne.s32.totalorder %s99, %s113
      %p115 = scmp.eq.s32.totalorder %s26, 0
      %p116 = por %p114, %p115
      %s118 = sadd.s32 %s117, 1
      %p121 = scmp.eq.s32.totalorder %s20, 1
      %p122 = scmp.ne.s32.totalorder %s117, %s119
      %p123 = scmp.eq.s32.totalorder %s20, 0
      %p124 = por %p122, %p123
      %p125 = scmp.ne.s32.totalorder %s117, %s119
      %p126 = scmp.eq.s32.totalorder %s25, 1
      %p127 = por %p125, %p126
      %p128 = scmp.ne.s32.totalorder %s119, %s120
      %p129 = scmp.eq.s32.totalorder %s25, 0
      %p130 = por %p128, %p129
      %p131 = scmp.ne.s32.totalorder %s119, %s120
      %p132 = scmp.eq.s32.totalorder %s26, 1
      %p133 = por %p131, %p132
      %p135 = scmp.ne.s32.totalorder %s120, %s134
      %p136 = scmp.eq.s32.totalorder %s26, 0
      %p137 = por %p135, %p136
      %s139 = sadd.s32 %s138, 1
      %p142 = scmp.eq.s32.totalorder %s20, 1
      %p143 = scmp.ne.s32.totalorder %s138, %s140
      %p144 = scmp.eq.s32.totalorder %s20, 0
      %p145 = por %p143, %p144
      %p146 = scmp.ne.s32.totalorder %s138, %s140
      %p147 = scmp.eq.s32.totalorder %s25, 1
      %p148 = por %p146, %p147
      %p149 = scmp.ne.s32.totalorder %s140, %s141
      %p150 = scmp.eq.s32.totalorder %s25, 0
      %p151 = por %p149, %p150
      %p152 = scmp.ne.s32.totalorder %s140, %s141
      %p153 = scmp.eq.s32.totalorder %s26, 1
      %p154 = por %p152, %p153
      %p156 = scmp.ne.s32.totalorder %s141, %s155
      %p157 = scmp.eq.s32.totalorder %s26, 0
      %p158 = por %p156, %p157
      %s159 = ssub.s32 %s20, %s27
      %p160 = scmp.eq.s32.totalorder %s159, 0
      %s162 = sadd.s32 %s161, 1
      %s163 = scalar_select %p160, %s161, %s162
      %p166 = pneg %p160
      %p167 = scmp.eq.s32.totalorder %s20, 1
      %p168 = por %p166, %p167
      %p169 = scmp.ne.s32.totalorder %s161, %s164
      %p170 = scmp.eq.s32.totalorder %s20, 0
      %p171 = por %p169, %p170
      %p172 = scmp.ne.s32.totalorder %s161, %s164
      %p173 = scmp.eq.s32.totalorder %s25, 1
      %p174 = por %p172, %p173
      %p175 = scmp.ne.s32.totalorder %s164, %s165
      %p176 = scmp.eq.s32.totalorder %s25, 0
      %p177 = por %p175, %p176
      %p178 = scmp.ne.s32.totalorder %s164, %s165
      %p179 = scmp.eq.s32.totalorder %s26, 1
      %p180 = por %p178, %p179
      %p182 = scmp.ne.s32.totalorder %s165, %s181
      %p183 = scmp.eq.s32.totalorder %s26, 0
      %p184 = por %p182, %p183
      %p185 = scmp.le.s32.totalorder 1, %s20
      %p186 = scmp.lt.s32.totalorder %s20, 3
      %p187 = pnand %p185, %p186
      %p188 = pneg %p187
      // Predicated region
      $region9: #{tpu_custom_call.1} parent=5 // pred_check
        _
      $region10: #{tpu_custom_call.1} parent=5 // pred_check_branch
        %190 = sbr.rel (%p187) target = $region12
      $region11: #{tpu_custom_call.1} parent=5 // pred_region
        %s191 = ssub.s32 %s20, 1
        // Predicated region
        $region13: #{tpu_custom_call.1} parent=11 // pred_check
          %p192 = pneg %p67
        $region14: #{tpu_custom_call.1} parent=11 // pred_check_branch
          %194 = sbr.rel (%p192) target = $region16
        $region15: #{tpu_custom_call.1} parent=11 // pred_region
          %196 = vsyncadd [#allocation8], 0
          %s197 = sshll.u32 %s1, 4
          %s198 = int_to_ptr.hbm [resolvable:$true] %s197
          %s199 = sshll.u32 [#allocation7], 4
          %s200 = int_to_ptr.vmem [resolvable:$true] %s199
          %205 = dma.hbm_to_vmem [thread:$0]  %s198, 512, %s200, [#allocation8], 64, 64, 4
        $region16: #{tpu_custom_call.1} parent=11 // pred_fallthru
          _
        // Predicated region
        $region17: #{tpu_custom_call.1} parent=11 // pred_check
          %p206 = pneg %p88
        $region18: #{tpu_custom_call.1} parent=11 // pred_check_branch
          %208 = sbr.rel (%p206) target = $region20
        $region19: #{tpu_custom_call.1} parent=11 // pred_region
          _
        $region20: #{tpu_custom_call.1} parent=11 // pred_fallthru
          _
        // Predicated region
        $region21: #{tpu_custom_call.1} parent=11 // pred_check
          %p209 = pneg %p109
        $region22: #{tpu_custom_call.1} parent=11 // pred_check_branch
          %211 = sbr.rel (%p209) target = $region24
        $region23: #{tpu_custom_call.1} parent=11 // pred_region
          %213 = vsyncadd [#allocation6], 0
          %s215 = sshll.u32 %s3, 4
          %s216 = int_to_ptr.vmem [resolvable:$true] %s215
          %218 = dma.vmem_to_smem %s216, 32, [#allocation9], [#allocation6]
        $region24: #{tpu_custom_call.1} parent=11 // pred_fallthru
          _
        // Predicated region
        $region25: #{tpu_custom_call.1} parent=11 // pred_check
          %p219 = pneg %p130
        $region26: #{tpu_custom_call.1} parent=11 // pred_check_branch
          %221 = sbr.rel (%p219) target = $region28
        $region27: #{tpu_custom_call.1} parent=11 // pred_region
          _
        $region28: #{tpu_custom_call.1} parent=11 // pred_fallthru
          _
        // Predicated region
        $region29: #{tpu_custom_call.1} parent=11 // pred_check
          %p222 = pneg %p151
        $region30: #{tpu_custom_call.1} parent=11 // pred_check_branch
          %224 = sbr.rel (%p222) target = $region32
        $region31: #{tpu_custom_call.1} parent=11 // pred_region
          _
        $region32: #{tpu_custom_call.1} parent=11 // pred_fallthru
          _
      $region12: #{tpu_custom_call.1} parent=5 // pred_fallthru
        _
      %p225 = scmp.lt.s32.totalorder %s20, 2
      // Predicated region
      $region33: #{tpu_custom_call.1} parent=5 // pred_check
        %p226 = pneg %p225
      $region34: #{tpu_custom_call.1} parent=5 // pred_check_branch
        %228 = sbr.rel (%p226) target = $region36
      $region35: #{tpu_custom_call.1} parent=5 // pred_region
        // Predicated region
        $region37: #{tpu_custom_call.1} parent=35 // pred_check
          %p229 = pneg %p40
        $region38: #{tpu_custom_call.1} parent=35 // pred_check_branch
          %231 = sbr.rel (%p229) target = $region40
        $region39: #{tpu_custom_call.1} parent=35 // pred_region
          #allocation12 [shape = 'u32[6]{0}', space=smem, size = 0x18, scoped, tag = 'DMA stride descriptor']
          %s232 = sand.u32 %s30, 1
          %s233 = scalar_lea.sflag [#allocation4], %s232
          %s234 = sand.u32 %s30, 1
          %s235 = smul.addr %s234, 64
          %s236 = scalar_lea.vmem [#allocation3], %s235
          %s237 = smul.u32 2, %s20
          %239 = vsyncadd %s233, 0
          %s240 = smul.addr %s237, 8
          %s241 = scalar_lea.hbm %s0, %s240
          %s243 = sshll.u32 1, 14
          %s244 = sxor.u32 4294967295, %s243
          %s246 = sld [smem:[#allocation0]]
          %s247 = sadd.s32 2, %s246
          %s249 = sshll.u32 7, 26
          %s250 = sxor.u32 4294967295, %s249
          %s251 = sand.u32 0, %s250
          %s252 = sshll.u32 %s247, 26
          %s253 = sor.u32 %s251, %s252
          %s254 = sshll.u32 %s241, 4
          %s255 = int_to_ptr.hbm [resolvable:$true] %s254
          %s256 = sshll.u32 %s236, 4
          %s257 = int_to_ptr.vmem [resolvable:$true] %s256
          %263 = sst [smem:[#allocation12]] 512
          %s264 = scalar_lea.smem [#allocation12], 1
          %265 = sst [smem:[%s264]] 256
          %s266 = scalar_lea.smem [#allocation12], 2
          %267 = sst [smem:[%s266]] 2
          %s268 = scalar_lea.smem [#allocation12], 3
          %269 = sst [smem:[%s268]] 128
          %s270 = scalar_lea.smem [#allocation12], 4
          %271 = sst [smem:[%s270]] 128
          %s272 = scalar_lea.smem [#allocation12], 5
          %273 = sst [smem:[%s272]] 8
          %275 = dma.general %s255, 1024, %s257, %s233, [#allocation11], [#allocation12], %s253, 0
        $region40: #{tpu_custom_call.1} parent=35 // pred_fallthru
          _
      $region36: #{tpu_custom_call.1} parent=5 // pred_fallthru
        _
      %p276 = scmp.le.s32.totalorder 1, %s20
      %p277 = scmp.lt.s32.totalorder %s20, 3
      %p278 = pnand %p276, %p277
      %p279 = pneg %p278
      // Predicated region
      $region41: #{tpu_custom_call.1} parent=5 // pred_check
        _
      $region42: #{tpu_custom_call.1} parent=5 // pred_check_branch
        %281 = sbr.rel (%p278) target = $region44
      $region43: #{tpu_custom_call.1} parent=5 // pred_region
        %s282 = ssub.s32 %s20, 1
        %s283 = sand.u32 %s33, 1
        %s284 = scalar_lea.sflag [#allocation4], %s283
        %s285 = sand.u32 %s33, 1
        %s286 = smul.addr %s285, 64
        %s287 = scalar_lea.vmem [#allocation3], %s286
        // Predicated region
        $region45: #{tpu_custom_call.1} parent=43 // pred_check
          %p288 = pneg %p46
        $region46: #{tpu_custom_call.1} parent=43 // pred_check_branch
          %290 = sbr.rel (%p288) target = $region48
        $region47: #{tpu_custom_call.1} parent=43 // pred_region
          %292 = dma.done %s284, 1024
        $region48: #{tpu_custom_call.1} parent=43 // pred_fallthru
          _
        // Predicated region
        $region49: #{tpu_custom_call.1} parent=43 // pred_check
          %p293 = pneg %p67
        $region50: #{tpu_custom_call.1} parent=43 // pred_check_branch
          %295 = sbr.rel (%p293) target = $region52
        $region51: #{tpu_custom_call.1} parent=43 // pred_region
          %297 = dma.done [#allocation8], 512
        $region52: #{tpu_custom_call.1} parent=43 // pred_fallthru
          _
        // Predicated region
        $region53: #{tpu_custom_call.1} parent=43 // pred_check
          %p298 = pneg %p109
        $region54: #{tpu_custom_call.1} parent=43 // pred_check_branch
          %300 = sbr.rel (%p298) target = $region56
        $region55: #{tpu_custom_call.1} parent=43 // pred_region
          %302 = dma.done [#allocation6], 32
        $region56: #{tpu_custom_call.1} parent=43 // pred_fallthru
          _
        %303 = sfence
        %s304 = sand.u32 %s33, 1
        %s305 = scalar_lea.sflag [#allocation4], %s304
        %s306 = sand.u32 %s33, 1
        %s307 = smul.addr %s306, 64
        %s308 = scalar_lea.vmem [#allocation3], %s307
        %p309 = pneg %p46
        %p310 = pneg %p43
        %p311 = pneg %p67
        %p312 = pneg %p64
        %p313 = pneg %p88
        %p314 = pneg %p85
        %p315 = pneg %p109
        %p316 = pneg %p106
        %p317 = pneg %p130
        %p318 = pneg %p127
        %p319 = pneg %p151
        %p320 = pneg %p148
        %p321 = pneg %p177
        %p322 = pneg %p174
        %s323 = sand.u32 %s164, 1
        %s324 = scalar_lea.sflag [#allocation5], %s323
        %s325 = sand.u32 %s164, 1
        %s326 = smul.addr %s325, 32
        %s327 = scalar_lea.vmem [#allocation10], %s326
        %s328 = smul.u32 2, %s25
        %s329 = smul.u32 2, %s25
        %v331 = vld [vmem:[%s287] sm:$0xff]
        %v332 = vld [vmem:[%s287 + $0x8] sm:$0xff]
        %v333 = vld [vmem:[%s287 + $0x10] sm:$0xff]
        %v334 = vld [vmem:[%s287 + $0x18] sm:$0xff]
        %v335 = vld [vmem:[%s287 + $0x20] sm:$0xff]
        %v336 = vld [vmem:[%s287 + $0x28] sm:$0xff]
        %v337 = vld [vmem:[%s287 + $0x30] sm:$0xff]
        %v338 = vld [vmem:[%s287 + $0x38] sm:$0xff]
        %v339 = vpack.c.bf16 %v332, %v331
        %v340 = vpack.c.bf16 %v334, %v333
        %v341 = vpack.c.bf16 %v336, %v335
        %v342 = vpack.c.bf16 %v338, %v337
        %v343 = vld [vmem:[#allocation7] sm:$0xf]
        %v344 = vld [vmem:[#allocation7 + $0x4] sm:$0xf]
        %v345 = vld [vmem:[#allocation7 + $0x8] sm:$0xf]
        %v346 = vld [vmem:[#allocation7 + $0xc] sm:$0xf]
        %v347 = vld [vmem:[%s2] sm:$0x1]
        %v349 = vperm.slane %v347, 0
        %v355 = vunpack.c.l.b16 %v343
        %v356 = vunpack.c.l.b16 %v344
        %v357 = vunpack.c.l.b16 %v345
        %v358 = vunpack.c.l.b16 %v346
        %v359 = vpack.c.b16 %v356, %v355
        %v360 = vpack.c.b16 %v358, %v357
        %vm363 = vcmask 261120
        %v365 = vsel %vm363, %v339, 0
        %v368 = vsel %vm363, %v340, 0
        %v371 = vsel %vm363, %v341, 0
        %v374 = vsel %vm363, %v342, 0
        %376 = vmatpush.bf16.msra.mxu0 0
        %377 = vmatpush.bf16.msra.mxu0 0
        %378 = vmatpush.bf16.msra.mxu0 0
        %379 = vmatpush.bf16.msra.mxu0 0
        %380 = vmatpush.bf16.msra.mxu0 0
        %381 = vmatpush.bf16.msra.mxu0 0
        %382 = vmatpush.bf16.msra.mxu0 %v360
        %383 = vmatpush.bf16.msra.mxu0 %v359
        %384 = vmatmul.bf16.gmra.mxu0 %v365
        %v385 = vpop.f32.mrf.mxu0
        %v386 = vadd.f32 %v349, %v385
        %v387 = vpop.f32.mrf.mxu0
        %v388 = vadd.f32 %v349, %v387
        %389 = vmatmul.bf16.gmra.mxu0 %v368
        %v390 = vpop.f32.mrf.mxu0
        %v391 = vadd.f32 %v349, %v390
        %v392 = vpop.f32.mrf.mxu0
        %v393 = vadd.f32 %v349, %v392
        %394 = vmatmul.bf16.gmra.mxu0 %v371
        %v395 = vpop.f32.mrf.mxu0
        %v396 = vadd.f32 %v349, %v395
        %v397 = vpop.f32.mrf.mxu0
        %v398 = vadd.f32 %v349, %v397
        %399 = vmatmul.bf16.gmra.mxu0 %v374
        %v400 = vpop.f32.mrf.mxu0
        %v401 = vadd.f32 %v349, %v400
        %v402 = vpop.f32.mrf.mxu0
        %v403 = vadd.f32 %v349, %v402
        %404 = vdwg.mxu0
        %v405 = vxor.u32 %v386, 2147483648
        %v406 = vxor.u32 %v388, 2147483648
        %v407 = vxor.u32 %v391, 2147483648
        %v408 = vxor.u32 %v393, 2147483648
        %v409 = vxor.u32 %v396, 2147483648
        %v410 = vxor.u32 %v398, 2147483648
        %v411 = vxor.u32 %v401, 2147483648
        %v412 = vxor.u32 %v403, 2147483648
        %v413 = vmul.f32 %v405, 1.442695
        %v414 = vpow.pop %v413
        %v415 = vmul.f32 %v406, 1.442695
        %v416 = vpow.pop %v415
        %v417 = vmul.f32 %v407, 1.442695
        %v418 = vpow.pop %v417
        %v419 = vmul.f32 %v408, 1.442695
        %v420 = vpow.pop %v419
        %v421 = vmul.f32 %v409, 1.442695
        %v422 = vpow.pop %v421
        %v423 = vmul.f32 %v410, 1.442695
        %v424 = vpow.pop %v423
        %v425 = vmul.f32 %v411, 1.442695
        %v426 = vpow.pop %v425
        %v427 = vmul.f32 %v412, 1.442695
        %v428 = vpow.pop %v427
        %v429 = vadd.f32 %v414, 1.0
        %v430 = vadd.f32 %v416, 1.0
        %v431 = vadd.f32 %v418, 1.0
        %v432 = vadd.f32 %v420, 1.0
        %v433 = vadd.f32 %v422, 1.0
        %v434 = vadd.f32 %v424, 1.0
        %v435 = vadd.f32 %v426, 1.0
        %v436 = vadd.f32 %v428, 1.0
        %v437 = vrcp.pop %v429
        %v438 = vmul.f32 %v429, %v437
        %v439 = vsub.f32 1.0, %v438
        %v440 = vmul.f32 %v437, %v439
        %v441 = vadd.f32 %v437, %v440
        %vm442 = vweird.f32 %v429
        %vm443 = vweird.f32 %v437
        %vm444 = vmor %vm442, %vm443
        %v445 = vsel %vm444, %v437, %v441
        %v446 = vand.u32 2147483647, %v429
        %vm447 = vcmp.eq.f32.partialorder %v446, 8.507059e+37
        %v448 = vand.u32 %v429, 2147483648
        %v449 = vor.u32 1.1754944e-38, %v448
        %v450 = vsel %vm447, %v449, %v445
        %v451 = vmul.f32 1.0, %v450
        %v452 = vrcp.pop %v430
        %v453 = vmul.f32 %v430, %v452
        %v454 = vsub.f32 1.0, %v453
        %v455 = vmul.f32 %v452, %v454
        %v456 = vadd.f32 %v452, %v455
        %vm457 = vweird.f32 %v430
        %vm458 = vweird.f32 %v452
        %vm459 = vmor %vm457, %vm458
        %v460 = vsel %vm459, %v452, %v456
        %v461 = vand.u32 2147483647, %v430
        %vm462 = vcmp.eq.f32.partialorder %v461, 8.507059e+37
        %v463 = vand.u32 %v430, 2147483648
        %v464 = vor.u32 1.1754944e-38, %v463
        %v465 = vsel %vm462, %v464, %v460
        %v466 = vmul.f32 1.0, %v465
        %v467 = vrcp.pop %v431
        %v468 = vmul.f32 %v431, %v467
        %v469 = vsub.f32 1.0, %v468
        %v470 = vmul.f32 %v467, %v469
        %v471 = vadd.f32 %v467, %v470
        %vm472 = vweird.f32 %v431
        %vm473 = vweird.f32 %v467
        %vm474 = vmor %vm472, %vm473
        %v475 = vsel %vm474, %v467, %v471
        %v476 = vand.u32 2147483647, %v431
        %vm477 = vcmp.eq.f32.partialorder %v476, 8.507059e+37
        %v478 = vand.u32 %v431, 2147483648
        %v479 = vor.u32 1.1754944e-38, %v478
        %v480 = vsel %vm477, %v479, %v475
        %v481 = vmul.f32 1.0, %v480
        %v482 = vrcp.pop %v432
        %v483 = vmul.f32 %v432, %v482
        %v484 = vsub.f32 1.0, %v483
        %v485 = vmul.f32 %v482, %v484
        %v486 = vadd.f32 %v482, %v485
        %vm487 = vweird.f32 %v432
        %vm488 = vweird.f32 %v482
        %vm489 = vmor %vm487, %vm488
        %v490 = vsel %vm489, %v482, %v486
        %v491 = vand.u32 2147483647, %v432
        %vm492 = vcmp.eq.f32.partialorder %v491, 8.507059e+37
        %v493 = vand.u32 %v432, 2147483648
        %v494 = vor.u32 1.1754944e-38, %v493
        %v495 = vsel %vm492, %v494, %v490
        %v496 = vmul.f32 1.0, %v495
        %v497 = vrcp.pop %v433
        %v498 = vmul.f32 %v433, %v497
        %v499 = vsub.f32 1.0, %v498
        %v500 = vmul.f32 %v497, %v499
        %v501 = vadd.f32 %v497, %v500
        %vm502 = vweird.f32 %v433
        %vm503 = vweird.f32 %v497
        %vm504 = vmor %vm502, %vm503
        %v505 = vsel %vm504, %v497, %v501
        %v506 = vand.u32 2147483647, %v433
        %vm507 = vcmp.eq.f32.partialorder %v506, 8.507059e+37
        %v508 = vand.u32 %v433, 2147483648
        %v509 = vor.u32 1.1754944e-38, %v508
        %v510 = vsel %vm507, %v509, %v505
        %v511 = vmul.f32 1.0, %v510
        %v512 = vrcp.pop %v434
        %v513 = vmul.f32 %v434, %v512
        %v514 = vsub.f32 1.0, %v513
        %v515 = vmul.f32 %v512, %v514
        %v516 = vadd.f32 %v512, %v515
        %vm517 = vweird.f32 %v434
        %vm518 = vweird.f32 %v512
        %vm519 = vmor %vm517, %vm518
        %v520 = vsel %vm519, %v512, %v516
        %v521 = vand.u32 2147483647, %v434
        %vm522 = vcmp.eq.f32.partialorder %v521, 8.507059e+37
        %v523 = vand.u32 %v434, 2147483648
        %v524 = vor.u32 1.1754944e-38, %v523
        %v525 = vsel %vm522, %v524, %v520
        %v526 = vmul.f32 1.0, %v525
        %v527 = vrcp.pop %v435
        %v528 = vmul.f32 %v435, %v527
        %v529 = vsub.f32 1.0, %v528
        %v530 = vmul.f32 %v527, %v529
        %v531 = vadd.f32 %v527, %v530
        %vm532 = vweird.f32 %v435
        %vm533 = vweird.f32 %v527
        %vm534 = vmor %vm532, %vm533
        %v535 = vsel %vm534, %v527, %v531
        %v536 = vand.u32 2147483647, %v435
        %vm537 = vcmp.eq.f32.partialorder %v536, 8.507059e+37
        %v538 = vand.u32 %v435, 2147483648
        %v539 = vor.u32 1.1754944e-38, %v538
        %v540 = vsel %vm537, %v539, %v535
        %v541 = vmul.f32 1.0, %v540
        %v542 = vrcp.pop %v436
        %v543 = vmul.f32 %v436, %v542
        %v544 = vsub.f32 1.0, %v543
        %v545 = vmul.f32 %v542, %v544
        %v546 = vadd.f32 %v542, %v545
        %vm547 = vweird.f32 %v436
        %vm548 = vweird.f32 %v542
        %vm549 = vmor %vm547, %vm548
        %v550 = vsel %vm549, %v542, %v546
        %v551 = vand.u32 2147483647, %v436
        %vm552 = vcmp.eq.f32.partialorder %v551, 8.507059e+37
        %v553 = vand.u32 %v436, 2147483648
        %v554 = vor.u32 1.1754944e-38, %v553
        %v555 = vsel %vm552, %v554, %v550
        %v556 = vmul.f32 1.0, %v555
        %v557 = vmul.f32 %v386, %v451
        %v558 = vmul.f32 %v388, %v466
        %v559 = vmul.f32 %v391, %v481
        %v560 = vmul.f32 %v393, %v496
        %v561 = vmul.f32 %v396, %v511
        %v562 = vmul.f32 %v398, %v526
        %v563 = vmul.f32 %v401, %v541
        %v564 = vmul.f32 %v403, %v556
        %v565 = vadd.f32 %v331, %v557
        %v566 = vadd.f32 %v332, %v558
        %v567 = vadd.f32 %v333, %v559
        %v568 = vadd.f32 %v334, %v560
        %v569 = vadd.f32 %v335, %v561
        %v570 = vadd.f32 %v336, %v562
        %v571 = vadd.f32 %v337, %v563
        %v572 = vadd.f32 %v338, %v564
        %v573 = vpack.c.bf16 %v566, %v565
        %v574 = vpack.c.bf16 %v568, %v567
        %v575 = vpack.c.bf16 %v570, %v569
        %v576 = vpack.c.bf16 %v572, %v571
        %s577 = scalar_lea.vmem [#allocation7], 16
        %v578 = vld [vmem:[%s577] sm:$0xf]
        %v579 = vld [vmem:[%s577 + $0x4] sm:$0xf]
        %v580 = vld [vmem:[%s577 + $0x8] sm:$0xf]
        %v581 = vld [vmem:[%s577 + $0xc] sm:$0xf]
        %s582 = scalar_lea.vmem %s2, 1
        %v583 = vld [vmem:[%s582] sm:$0x1]
        %v585 = vperm.slane %v583, 0
        %v591 = vunpack.c.l.b16 %v578
        %v592 = vunpack.c.l.b16 %v579
        %v593 = vunpack.c.l.b16 %v580
        %v594 = vunpack.c.l.b16 %v581
        %v595 = vpack.c.b16 %v592, %v591
        %v596 = vpack.c.b16 %v594, %v593
        %v600 = vsel %vm363, %v573, 0
        %v603 = vsel %vm363, %v574, 0
        %v606 = vsel %vm363, %v575, 0
        %v609 = vsel %vm363, %v576, 0
        %611 = vmatpush.bf16.msra.mxu0 0
        %612 = vmatpush.bf16.msra.mxu0 0
        %613 = vmatpush.bf16.msra.mxu0 0
        %614 = vmatpush.bf16.msra.mxu0 0
        %615 = vmatpush.bf16.msra.mxu0 0
        %616 = vmatpush.bf16.msra.mxu0 0
        %617 = vmatpush.bf16.msra.mxu0 %v596
        %618 = vmatpush.bf16.msra.mxu0 %v595
        %619 = vmatmul.bf16.gmra.mxu0 %v600
        %v620 = vpop.f32.mrf.mxu0
        %v621 = vadd.f32 %v585, %v620
        %v622 = vpop.f32.mrf.mxu0
        %v623 = vadd.f32 %v585, %v622
        %624 = vmatmul.bf16.gmra.mxu0 %v603
        %v625 = vpop.f32.mrf.mxu0
        %v626 = vadd.f32 %v585, %v625
        %v627 = vpop.f32.mrf.mxu0
        %v628 = vadd.f32 %v585, %v627
        %629 = vmatmul.bf16.gmra.mxu0 %v606
        %v630 = vpop.f32.mrf.mxu0
        %v631 = vadd.f32 %v585, %v630
        %v632 = vpop.f32.mrf.mxu0
        %v633 = vadd.f32 %v585, %v632
        %634 = vmatmul.bf16.gmra.mxu0 %v609
        %v635 = vpop.f32.mrf.mxu0
        %v636 = vadd.f32 %v585, %v635
        %v637 = vpop.f32.mrf.mxu0
        %v638 = vadd.f32 %v585, %v637
        %639 = vdwg.mxu0
        %v640 = vxor.u32 %v621, 2147483648
        %v641 = vxor.u32 %v623, 2147483648
        %v642 = vxor.u32 %v626, 2147483648
        %v643 = vxor.u32 %v628, 2147483648
        %v644 = vxor.u32 %v631, 2147483648
        %v645 = vxor.u32 %v633, 2147483648
        %v646 = vxor.u32 %v636, 2147483648
        %v647 = vxor.u32 %v638, 2147483648
        %v648 = vmul.f32 %v640, 1.442695
        %v649 = vpow.pop %v648
        %v650 = vmul.f32 %v641, 1.442695
        %v651 = vpow.pop %v650
        %v652 = vmul.f32 %v642, 1.442695
        %v653 = vpow.pop %v652
        %v654 = vmul.f32 %v643, 1.442695
        %v655 = vpow.pop %v654
        %v656 = vmul.f32 %v644, 1.442695
        %v657 = vpow.pop %v656
        %v658 = vmul.f32 %v645, 1.442695
        %v659 = vpow.pop %v658
        %v660 = vmul.f32 %v646, 1.442695
        %v661 = vpow.pop %v660
        %v662 = vmul.f32 %v647, 1.442695
        %v663 = vpow.pop %v662
        %v664 = vadd.f32 %v649, 1.0
        %v665 = vadd.f32 %v651, 1.0
        %v666 = vadd.f32 %v653, 1.0
        %v667 = vadd.f32 %v655, 1.0
        %v668 = vadd.f32 %v657, 1.0
        %v669 = vadd.f32 %v659, 1.0
        %v670 = vadd.f32 %v661, 1.0
        %v671 = vadd.f32 %v663, 1.0
        %v672 = vrcp.pop %v664
        %v673 = vmul.f32 %v664, %v672
        %v674 = vsub.f32 1.0, %v673
        %v675 = vmul.f32 %v672, %v674
        %v676 = vadd.f32 %v672, %v675
        %vm677 = vweird.f32 %v664
        %vm678 = vweird.f32 %v672
        %vm679 = vmor %vm677, %vm678
        %v680 = vsel %vm679, %v672, %v676
        %v681 = vand.u32 2147483647, %v664
        %vm682 = vcmp.eq.f32.partialorder %v681, 8.507059e+37
        %v683 = vand.u32 %v664, 2147483648
        %v684 = vor.u32 1.1754944e-38, %v683
        %v685 = vsel %vm682, %v684, %v680
        %v686 = vmul.f32 1.0, %v685
        %v687 = vrcp.pop %v665
        %v688 = vmul.f32 %v665, %v687
        %v689 = vsub.f32 1.0, %v688
        %v690 = vmul.f32 %v687, %v689
        %v691 = vadd.f32 %v687, %v690
        %vm692 = vweird.f32 %v665
        %vm693 = vweird.f32 %v687
        %vm694 = vmor %vm692, %vm693
        %v695 = vsel %vm694, %v687, %v691
        %v696 = vand.u32 2147483647, %v665
        %vm697 = vcmp.eq.f32.partialorder %v696, 8.507059e+37
        %v698 = vand.u32 %v665, 2147483648
        %v699 = vor.u32 1.1754944e-38, %v698
        %v700 = vsel %vm697, %v699, %v695
        %v701 = vmul.f32 1.0, %v700
        %v702 = vrcp.pop %v666
        %v703 = vmul.f32 %v666, %v702
        %v704 = vsub.f32 1.0, %v703
        %v705 = vmul.f32 %v702, %v704
        %v706 = vadd.f32 %v702, %v705
        %vm707 = vweird.f32 %v666
        %vm708 = vweird.f32 %v702
        %vm709 = vmor %vm707, %vm708
        %v710 = vsel %vm709, %v702, %v706
        %v711 = vand.u32 2147483647, %v666
        %vm712 = vcmp.eq.f32.partialorder %v711, 8.507059e+37
        %v713 = vand.u32 %v666, 2147483648
        %v714 = vor.u32 1.1754944e-38, %v713
        %v715 = vsel %vm712, %v714, %v710
        %v716 = vmul.f32 1.0, %v715
        %v717 = vrcp.pop %v667
        %v718 = vmul.f32 %v667, %v717
        %v719 = vsub.f32 1.0, %v718
        %v720 = vmul.f32 %v717, %v719
        %v721 = vadd.f32 %v717, %v720
        %vm722 = vweird.f32 %v667
        %vm723 = vweird.f32 %v717
        %vm724 = vmor %vm722, %vm723
        %v725 = vsel %vm724, %v717, %v721
        %v726 = vand.u32 2147483647, %v667
        %vm727 = vcmp.eq.f32.partialorder %v726, 8.507059e+37
        %v728 = vand.u32 %v667, 2147483648
        %v729 = vor.u32 1.1754944e-38, %v728
        %v730 = vsel %vm727, %v729, %v725
        %v731 = vmul.f32 1.0, %v730
        %v732 = vrcp.pop %v668
        %v733 = vmul.f32 %v668, %v732
        %v734 = vsub.f32 1.0, %v733
        %v735 = vmul.f32 %v732, %v734
        %v736 = vadd.f32 %v732, %v735
        %vm737 = vweird.f32 %v668
        %vm738 = vweird.f32 %v732
        %vm739 = vmor %vm737, %vm738
        %v740 = vsel %vm739, %v732, %v736
        %v741 = vand.u32 2147483647, %v668
        %vm742 = vcmp.eq.f32.partialorder %v741, 8.507059e+37
        %v743 = vand.u32 %v668, 2147483648
        %v744 = vor.u32 1.1754944e-38, %v743
        %v745 = vsel %vm742, %v744, %v740
        %v746 = vmul.f32 1.0, %v745
        %v747 = vrcp.pop %v669
        %v748 = vmul.f32 %v669, %v747
        %v749 = vsub.f32 1.0, %v748
        %v750 = vmul.f32 %v747, %v749
        %v751 = vadd.f32 %v747, %v750
        %vm752 = vweird.f32 %v669
        %vm753 = vweird.f32 %v747
        %vm754 = vmor %vm752, %vm753
        %v755 = vsel %vm754, %v747, %v751
        %v756 = vand.u32 2147483647, %v669
        %vm757 = vcmp.eq.f32.partialorder %v756, 8.507059e+37
        %v758 = vand.u32 %v669, 2147483648
        %v759 = vor.u32 1.1754944e-38, %v758
        %v760 = vsel %vm757, %v759, %v755
        %v761 = vmul.f32 1.0, %v760
        %v762 = vrcp.pop %v670
        %v763 = vmul.f32 %v670, %v762
        %v764 = vsub.f32 1.0, %v763
        %v765 = vmul.f32 %v762, %v764
        %v766 = vadd.f32 %v762, %v765
        %vm767 = vweird.f32 %v670
        %vm768 = vweird.f32 %v762
        %vm769 = vmor %vm767, %vm768
        %v770 = vsel %vm769, %v762, %v766
        %v771 = vand.u32 2147483647, %v670
        %vm772 = vcmp.eq.f32.partialorder %v771, 8.507059e+37
        %v773 = vand.u32 %v670, 2147483648
        %v774 = vor.u32 1.1754944e-38, %v773
        %v775 = vsel %vm772, %v774, %v770
        %v776 = vmul.f32 1.0, %v775
        %v777 = vrcp.pop %v671
        %v778 = vmul.f32 %v671, %v777
        %v779 = vsub.f32 1.0, %v778
        %v780 = vmul.f32 %v777, %v779
        %v781 = vadd.f32 %v777, %v780
        %vm782 = vweird.f32 %v671
        %vm783 = vweird.f32 %v777
        %vm784 = vmor %vm782, %vm783
        %v785 = vsel %vm784, %v777, %v781
        %v786 = vand.u32 2147483647, %v671
        %vm787 = vcmp.eq.f32.partialorder %v786, 8.507059e+37
        %v788 = vand.u32 %v671, 2147483648
        %v789 = vor.u32 1.1754944e-38, %v788
        %v790 = vsel %vm787, %v789, %v785
        %v791 = vmul.f32 1.0, %v790
        %v792 = vmul.f32 %v621, %v686
        %v793 = vmul.f32 %v623, %v701
        %v794 = vmul.f32 %v626, %v716
        %v795 = vmul.f32 %v628, %v731
        %v796 = vmul.f32 %v631, %v746
        %v797 = vmul.f32 %v633, %v761
        %v798 = vmul.f32 %v636, %v776
        %v799 = vmul.f32 %v638, %v791
        %v800 = vadd.f32 %v565, %v792
        %v801 = vadd.f32 %v566, %v793
        %v802 = vadd.f32 %v567, %v794
        %v803 = vadd.f32 %v568, %v795
        %v804 = vadd.f32 %v569, %v796
        %v805 = vadd.f32 %v570, %v797
        %v806 = vadd.f32 %v571, %v798
        %v807 = vadd.f32 %v572, %v799
        %s808 = sld [smem:[#allocation9]]
        %v809 = vstv %s808
        %v810 = vmul.f32 %v809, %v800
        %v811 = vmul.f32 %v809, %v801
        %s812 = sld [smem:[#allocation9 + $0x1]]
        %v813 = vstv %s812
        %v814 = vmul.f32 %v813, %v802
        %v815 = vmul.f32 %v813, %v803
        %v816 = vadd.f32 %v810, %v814
        %v817 = vadd.f32 %v811, %v815
        %s818 = sld [smem:[#allocation9 + $0x2]]
        %v819 = vstv %s818
        %v820 = vmul.f32 %v819, %v804
        %v821 = vmul.f32 %v819, %v805
        %v822 = vadd.f32 %v816, %v820
        %v823 = vadd.f32 %v817, %v821
        %s824 = sld [smem:[#allocation9 + $0x3]]
        %v825 = vstv %s824
        %v826 = vmul.f32 %v825, %v806
        %v827 = vmul.f32 %v825, %v807
        %v828 = vadd.f32 %v822, %v826
        %v829 = vadd.f32 %v823, %v827
        %830 = vst.msk [vmem:[#allocation2] sm:$0xff] %vm363, %v828
        %831 = vst.msk [vmem:[#allocation2 + $0x8] sm:$0xff] %vm363, %v829
        %s832 = sld [smem:[#allocation9 + $0x80]]
        %v833 = vstv %s832
        %v834 = vmul.f32 %v833, %v800
        %v835 = vmul.f32 %v833, %v801
        %s836 = sld [smem:[#allocation9 + $0x81]]
        %v837 = vstv %s836
        %v838 = vmul.f32 %v837, %v802
        %v839 = vmul.f32 %v837, %v803
        %v840 = vadd.f32 %v834, %v838
        %v841 = vadd.f32 %v835, %v839
        %s842 = sld [smem:[#allocation9 + $0x82]]
        %v843 = vstv %s842
        %v844 = vmul.f32 %v843, %v804
        %v845 = vmul.f32 %v843, %v805
        %v846 = vadd.f32 %v840, %v844
        %v847 = vadd.f32 %v841, %v845
        %s848 = sld [smem:[#allocation9 + $0x83]]
        %v849 = vstv %s848
        %v850 = vmul.f32 %v849, %v806
        %v851 = vmul.f32 %v849, %v807
        %v852 = vadd.f32 %v846, %v850
        %v853 = vadd.f32 %v847, %v851
        %854 = vst.msk [vmem:[#allocation2 + $0x10] sm:$0xff] %vm363, %v852
        %855 = vst.msk [vmem:[#allocation2 + $0x18] sm:$0xff] %vm363, %v853
        %v856 = vld [vmem:[#allocation2] sm:$0xff]
        %v857 = vld [vmem:[#allocation2 + $0x8] sm:$0xff]
        %v858 = vld [vmem:[#allocation2 + $0x10] sm:$0xff]
        %v859 = vld [vmem:[#allocation2 + $0x18] sm:$0xff]
        %v860 = vpack.c.bf16 %v857, %v856
        %v861 = vpack.c.bf16 %v859, %v858
        %v862 = vld [vmem:[%s4] sm:$0xf]
        %v863 = vld [vmem:[%s4 + $0x4] sm:$0xf]
        %v864 = vld [vmem:[%s4 + $0x8] sm:$0xf]
        %v865 = vld [vmem:[%s4 + $0xc] sm:$0xf]
        %v870 = vunpack.c.l.b16 %v862
        %v871 = vunpack.c.l.b16 %v863
        %v872 = vunpack.c.l.b16 %v864
        %v873 = vunpack.c.l.b16 %v865
        %v874 = vpack.c.b16 %v871, %v870
        %v875 = vpack.c.b16 %v873, %v872
        %v879 = vsel %vm363, %v860, 0
        %v882 = vsel %vm363, %v861, 0
        %884 = vmatpush.bf16.msra.mxu0 0
        %885 = vmatpush.bf16.msra.mxu0 0
        %886 = vmatpush.bf16.msra.mxu0 0
        %887 = vmatpush.bf16.msra.mxu0 0
        %888 = vmatpush.bf16.msra.mxu0 0
        %889 = vmatpush.bf16.msra.mxu0 0
        %890 = vmatpush.bf16.msra.mxu0 %v875
        %891 = vmatpush.bf16.msra.mxu0 %v874
        %892 = vmatmul.bf16.gmra.mxu0 %v879
        %v893 = vpop.f32.mrf.mxu0
        %v894 = vadd.f32 0.0, %v893
        %v895 = vpop.f32.mrf.mxu0
        %v896 = vadd.f32 0.0, %v895
        %897 = vmatmul.bf16.gmra.mxu0 %v882
        %v898 = vpop.f32.mrf.mxu0
        %v899 = vadd.f32 0.0, %v898
        %v900 = vpop.f32.mrf.mxu0
        %v901 = vadd.f32 0.0, %v900
        %902 = vdwg.mxu0
        %v903 = vpack.c.bf16 %v896, %v894
        %v904 = vpack.c.bf16 %v901, %v899
        %v905 = vld [vmem:[%s5] sm:$0xf]
        %v906 = vld [vmem:[%s5 + $0x4] sm:$0xf]
        %v909 = vunpack.c.l.b16 %v905
        %v910 = vunpack.c.l.b16 %v906
        %v911 = vpack.c.b16 %v910, %v909
        %vm913 = vcmask 130048
        %v915 = vsel %vm913, %v903, 0
        %v918 = vsel %vm913, %v904, 0
        %920 = vmatpush.bf16.msra.mxu0 0
        %921 = vmatpush.bf16.msra.mxu0 0
        %922 = vmatpush.bf16.msra.mxu0 0
        %923 = vmatpush.bf16.msra.mxu0 0
        %924 = vmatpush.bf16.msra.mxu0 0
        %925 = vmatpush.bf16.msra.mxu0 0
        %926 = vmatpush.bf16.msra.mxu0 0
        %927 = vmatpush.bf16.msra.mxu0 %v911
        %928 = vmatmul.bf16.gmra.mxu0 %v915
        %v929 = vpop.f32.mrf.mxu0
        %v930 = vadd.f32 0.0, %v929
        %v931 = vpop.f32.mrf.mxu0
        %v932 = vadd.f32 0.0, %v931
        %933 = vmatmul.bf16.gmra.mxu0 %v918
        %v934 = vpop.f32.mrf.mxu0
        %v935 = vadd.f32 0.0, %v934
        %v936 = vpop.f32.mrf.mxu0
        %v937 = vadd.f32 0.0, %v936
        %938 = vdwg.mxu0
        %939 = vst.msk [vmem:[%s327] sm:$0xff] %vm363, %v930
        %940 = vst.msk [vmem:[%s327 + $0x8] sm:$0xff] %vm363, %v932
        %941 = vst.msk [vmem:[%s327 + $0x10] sm:$0xff] %vm363, %v935
        %942 = vst.msk [vmem:[%s327 + $0x18] sm:$0xff] %vm363, %v937
        %s943 = sand.u32 %s164, 1
        %s944 = scalar_lea.sflag [#allocation5], %s943
        %s945 = sand.u32 %s164, 1
        %s946 = smul.addr %s945, 32
        %s947 = scalar_lea.vmem [#allocation10], %s946
        // Predicated region
        $region57: #{tpu_custom_call.1} parent=43 // pred_check
          %p948 = pneg %p174
        $region58: #{tpu_custom_call.1} parent=43 // pred_check_branch
          %950 = sbr.rel (%p948) target = $region60
        $region59: #{tpu_custom_call.1} parent=43 // pred_region
          #allocation14 [shape = 'u32[6]{0}', space=smem, size = 0x18, scoped, tag = 'DMA stride descriptor']
          %s951 = smul.u32 2, %s25
          %953 = vsyncadd %s944, 0
          %s954 = smul.addr %s951, 8
          %s955 = scalar_lea.hbm %s6, %s954
          %s957 = sshll.u32 1, 14
          %s958 = sxor.u32 4294967295, %s957
          %s961 = sshll.u32 7, 18
          %s962 = sxor.u32 4294967295, %s961
          %s963 = sand.u32 0, %s962
          %s965 = sor.u32 %s963, 0
          %s966 = sshll.u32 %s947, 4
          %s967 = int_to_ptr.vmem [resolvable:$true] %s966
          %s968 = sshll.u32 %s955, 4
          %s969 = int_to_ptr.hbm [resolvable:$true] %s968
          %975 = sst [smem:[#allocation14]] 256
          %s976 = scalar_lea.smem [#allocation14], 1
          %977 = sst [smem:[%s976]] 512
          %s978 = scalar_lea.smem [#allocation14], 2
          %979 = sst [smem:[%s978]] 2
          %s980 = scalar_lea.smem [#allocation14], 3
          %981 = sst [smem:[%s980]] 128
          %s982 = scalar_lea.smem [#allocation14], 4
          %983 = sst [smem:[%s982]] 128
          %s984 = scalar_lea.smem [#allocation14], 5
          %985 = sst [smem:[%s984]] 8
          %987 = dma.general %s967, 512, %s969, %s944, [#allocation13], [#allocation14], %s965, 0
        $region60: #{tpu_custom_call.1} parent=43 // pred_fallthru
          _
      $region44: #{tpu_custom_call.1} parent=5 // pred_fallthru
        _
      %p988 = scmp.le.s32.totalorder 2, %s20
      // Predicated region
      $region61: #{tpu_custom_call.1} parent=5 // pred_check
        %p989 = pneg %p988
      $region62: #{tpu_custom_call.1} parent=5 // pred_check_branch
        %991 = sbr.rel (%p989) target = $region64
      $region63: #{tpu_custom_call.1} parent=5 // pred_region
        %s992 = ssub.s32 %s20, 2
        // Predicated region
        $region65: #{tpu_custom_call.1} parent=63 // pred_check
          %p993 = pneg %p180
        $region66: #{tpu_custom_call.1} parent=63 // pred_check_branch
          %995 = sbr.rel (%p993) target = $region68
        $region67: #{tpu_custom_call.1} parent=63 // pred_region
          %s996 = sand.u32 %s165, 1
          %s997 = scalar_lea.sflag [#allocation5], %s996
          %s998 = sand.u32 %s165, 1
          %s999 = smul.addr %s998, 32
          %s1000 = scalar_lea.vmem [#allocation10], %s999
          %1002 = dma.done %s997, 512
        $region68: #{tpu_custom_call.1} parent=63 // pred_fallthru
          _
      $region64: #{tpu_custom_call.1} parent=5 // pred_fallthru
        _
    $region6: #{tpu_custom_call.1} parent=1 // loop_footer
      %s24 = sadd.s32 1, %s20
    $region7: #{tpu_custom_call.1} parent=1 // loop_footer_branch
      %19 = sbr.rel target = $region3
    $region8: #{tpu_custom_call.1} parent=1 // loop_exit
      _
    %1003 = vsyncpa [#allocation4], 1
    %s1004 = scalar_lea.sflag [#allocation4], 1
    %1005 = vsyncpa %s1004, 1
    %1006 = vsyncpa [#allocation8], 1
    %1007 = vsyncpa [#allocation5], 1
    %s1008 = scalar_lea.sflag [#allocation5], 1
    %1009 = vsyncpa %s1008, 1
    %1010 = vsyncpa [#allocation6], 1
    %s1011 = scalar_lea.sflag [#allocation6], 1
    %1012 = vsyncpa %s1011, 1

</llo_original>
